<compile_context>
chip_gen: v5e
topology: v5e:2x2
jax: 0.10.0
libtpu: 0.0.40
codegen_flags: <defaults>
</compile_context>

<pallas_src>
import functools

import jax
import jax.numpy as jnp
import numpy as np
from jax.experimental import pallas as pl
from jax.experimental.pallas import tpu as pltpu


# ----------------------------- Pallas kernel --------------------------------
def attention_kernel(w_ref, x_ref, o_ref, fgh_sc, res_sc, *, C, H, W):
    """One grid step processes `Bt` batch elements with lane-dense (C, H*W) I/O.

    w_ref : (3C, C)        packed [Wf; Wg; Wh] 1x1-conv weights
    x_ref : (Bt, C, H*W)   input block  (H*W on the lane axis)
    o_ref : (Bt, C, H*W)   output block
    fgh_sc: (Bt, 3C, H, W) f32 VMEM scratch ((H, W) view of the conv outputs)
    res_sc: (Bt, C, H*W)   f32 VMEM scratch (lane-dense view of h @ attn_map)
    """
    Bt = x_ref.shape[0]

    x2 = x_ref[...]                                   # (Bt, C, N) f32, full-lane load
    w = w_ref[...]                                    # (3C, C)

    # --- 1x1 convs for f, g, h as ONE MXU batched matmul over channels -------
    # fgh[b, o, n] = sum_c w[o, c] * x[b, c, n]
    wb = jnp.broadcast_to(w, (Bt, 3 * C, C))
    fgh = jnp.einsum('boc,bcn->bon', wb, x2,
                     preferred_element_type=jnp.float32)      # (Bt, 3C, N)

    # --- relayout (Bt, 3C, N) -> (Bt, 3C, H, W) through VMEM scratch ---------
    # Only the two spatial matmuls need the (H, W) view; everything else stays
    # lane-dense.  Static slices + stores are used instead of an in-register
    # minor-dim reshape (robust lowering).
    for i in range(H):
        fgh_sc[:, :, i, :] = fgh[:, :, i * W:(i + 1) * W]

    # bf16 MXU operands, f32 accumulation.
    f = fgh_sc[:, 0 * C:1 * C, :, :].reshape(Bt * C, H, W).astype(jnp.bfloat16)
    g = fgh_sc[:, 1 * C:2 * C, :, :].reshape(Bt * C, H, W).astype(jnp.bfloat16)
    h = fgh_sc[:, 2 * C:3 * C, :, :].reshape(Bt * C, H, W).astype(jnp.bfloat16)

    # --- torch.matmul(f, g): batched over (batch*channel), matmul over (H, W) ---
    s = jnp.einsum('zhw,zwk->zhk', f, g,
                   preferred_element_type=jnp.float32)        # (Bt*C, H, W) f32

    # --- softmax over the channel dim (PyTorch dim=1) -------------------------
    # Kept in the matmul layout (avoids two extra relayouts); the reduction axis
    # is a leading dim, so there is no cross-lane (XLU) work either way.
    s4 = s.reshape(Bt, C, H, W)                       # leading-dim split only
    m = jnp.max(s4, axis=1, keepdims=True)
    p = jnp.exp(s4 - m)                               # EUP
    denom = jnp.sum(p, axis=1, keepdims=True)
    attn_map = p * pl.reciprocal(denom, approx=False) # divide off the VALU slot
    am = attn_map.astype(jnp.bfloat16).reshape(Bt * C, H, W)

    # --- torch.matmul(h, attn_map) --------------------------------------------
    attn = jnp.einsum('zhw,zwk->zhk', h, am,
                      preferred_element_type=jnp.float32)     # (Bt*C, H, W) f32
    attn4 = attn.reshape(Bt, C, H, W)                 # leading-dim split only

    # --- relayout back to lane-dense, residual add, full-lane store ----------
    for i in range(H):
        res_sc[:, :, i * W:(i + 1) * W] = attn4[:, :, i, :]

    o_ref[...] = (x2 + res_sc[...]).astype(o_ref.dtype)


# ------------------------------ wrapper --------------------------------------
def _pick_block_b(B, C, N):
    """Batch elements per grid step: fill a conservative VMEM budget, but keep a
    few grid steps for pipelining and for v7x's two TensorCores."""
    vmem_budget = 40 * 1024 * 1024          # conservative vs v7x's 64 MiB VMEM
    per_elem = 32 * C * N * 4               # rough per-element in-kernel working set
    target_steps = min(B, 8)
    bb = max(1, min(vmem_budget // per_elem, B // max(target_steps, 1)))
    bb = min(bb, B)
    while B % bb:
        bb -= 1
    return int(bb)


@functools.partial(jax.jit, static_argnames=("block_b",))
def attention_forward(x, wf, wg, wh, block_b=None):
    B, C, H, W = x.shape
    assert H == W, "torch.matmul over spatial dims requires square feature maps"
    N = H * W

    w_packed = jnp.concatenate([wf, wg, wh], axis=0)   # (3C, C): one buffer, one DMA
    x2 = x.reshape(B, C, N)                            # lane-dense view (free in XLA)

    if block_b is None:
        block_b = _pick_block_b(B, C, N)
    grid_b = B // block_b

    # TODO(synk): for very large C*H*W (one batch element's working set > VMEM),
    # add an H-row grid axis / two-pass structure instead of batch-only tiling.

    base = block_b * C * N * 4
    vmem_limit = int(min(48 * 1024 * 1024, max(4 * 1024 * 1024, 32 * base + (1 << 20))))

    cost = pl.CostEstimate(
        flops=2 * B * (3 * C) * C * N + 2 * (2 * B * C * H * W * W),
        transcendentals=B * C * H * W,
        bytes_accessed=(2 * B * C * N + 3 * C * C) * 4,
    )

    kernel = functools.partial(attention_kernel, C=C, H=H, W=W)

    out2 = pl.pallas_call(
        kernel,
        out_shape=jax.ShapeDtypeStruct((B, C, N), x.dtype),
        grid_spec=pltpu.PrefetchScalarGridSpec(
            num_scalar_prefetch=0,
            grid=(grid_b,),
            in_specs=[
                pl.BlockSpec((3 * C, C), lambda b: (0, 0)),            # packed weights
                pl.BlockSpec((block_b, C, N), lambda b: (b, 0, 0)),    # x (lane-dense)
            ],
            out_specs=pl.BlockSpec((block_b, C, N), lambda b: (b, 0, 0)),
            scratch_shapes=[
                pltpu.VMEM((block_b, 3 * C, H, W), jnp.float32),
                pltpu.VMEM((block_b, C, N), jnp.float32),
            ],
        ),
        compiler_params=pltpu.CompilerParams(
            dimension_semantics=("parallel",),
            vmem_limit_bytes=vmem_limit,
        ),
        cost_estimate=cost,
    )(w_packed, x2)

    return out2.reshape(B, C, H, W)


# --------------------------- parameter setup (glue) ---------------------------
def spectral_normalize(w2d):
    """Divide a (C_out, C_in) weight by its largest singular value.

    PyTorch's spectral_norm runs one power iteration per forward with a persistent
    random `u`; here the exact top singular value is used (same mathematical
    target; also fixes the all-ones power-iteration-init concern from review).
    """
    sigma = jnp.linalg.svd(w2d, compute_uv=False)[0]
    return w2d / sigma


# ------------------------------ pure-JAX reference ----------------------------
def reference(x, wf, wg, wh):
    f = jnp.einsum('oc,bchw->bohw', wf, x)
    g = jnp.einsum('oc,bchw->bohw', wg, x)
    h = jnp.einsum('oc,bchw->bohw', wh, x)
    s = jnp.einsum('bchw,bcwk->bchk', f, g)
    attn_map = jax.nn.softmax(s, axis=1)               # softmax over channels (dim=1)
    attn = jnp.einsum('bchw,bcwk->bchk', h, attn_map)
    return x + attn


# ----------------------------------- main -------------------------------------
if __name__ == "__main__":
    B, C, H, W = 2, 4, 16, 16
    key = jax.random.PRNGKey(0)
    kx, kf, kg, kh = jax.random.split(key, 4)

    bound = 1.0 / np.sqrt(C)
    wf = spectral_normalize(jax.random.uniform(kf, (C, C), jnp.float32, -bound, bound))
    wg = spectral_normalize(jax.random.uniform(kg, (C, C), jnp.float32, -bound, bound))
    wh = spectral_normalize(jax.random.uniform(kh, (C, C), jnp.float32, -bound, bound))
    x = jax.random.normal(kx, (B, C, H, W), jnp.float32)

    out = attention_forward(x, wf, wg, wh)
    out = jax.block_until_ready(out)

    ref = reference(x, wf, wg, wh)
    # Kernel uses bf16 MXU operands (f32 accumulation) vs the pure-f32 reference,
    # so the tolerance is loosened accordingly. Structural bugs would still be O(1).
    np.testing.assert_allclose(np.asarray(out), np.asarray(ref), rtol=1e-1, atol=1e-1)
    print("KERNEL_OK")
</pallas_src>

<mosaic_0001>
module attributes {stable_mosaic.version = 11 : i64} {
  func.func @attention_kernel(%arg0: i32, %arg1: memref<12x4xf32, #tpu.memory_space<vmem>>, %arg2: memref<1x4x256xf32, #tpu.memory_space<vmem>>, %arg3: memref<1x4x256xf32, #tpu.memory_space<vmem>>, %arg4: memref<1x12x16x16xf32, #tpu.memory_space<vmem>>, %arg5: memref<1x4x256xf32, #tpu.memory_space<vmem>>) attributes {dimension_semantics = [#tpu.dimension_semantics<parallel>], iteration_bounds = array<i64: 2>, scalar_prefetch = 0 : i64, scratch_operands = 2 : i64, tpu.core_type = #tpu.core_type<tc>, window_params = [{pipeline_mode = #tpu.pipeline_mode<synchronous>, transform_indices = @transform_0, window_bounds = array<i64: 12, 4>}, {transform_indices = @transform_1, window_bounds = array<i64: 1, 4, 256>}, {transform_indices = @transform_2, window_bounds = array<i64: 1, 4, 256>}]} {
    %c0 = arith.constant 0 : index
    %c0_0 = arith.constant 0 : index
    %c0_1 = arith.constant 0 : index
    %0 = vector.load %arg2[%c0, %c0_0, %c0_1] : memref<1x4x256xf32, #tpu.memory_space<vmem>>, vector<1x4x256xf32>
    %c0_2 = arith.constant 0 : index
    %c0_3 = arith.constant 0 : index
    %1 = vector.load %arg1[%c0_2, %c0_3] : memref<12x4xf32, #tpu.memory_space<vmem>>, vector<12x4xf32>
    %2 = vector.shape_cast %1 : vector<12x4xf32> to vector<1x12x4xf32>
    "tpu.trace_start"() <{level = 10 : i32, message = "boc,bcn->bon"}> : () -> ()
    %cst = arith.constant dense<0.000000e+00> : vector<1x12x256xf32>
    %3 = tpu.matmul %2, %0, %cst {dimension_numbers = #tpu.dot_dimension_numbers<[2], [1], [1], [2], [0, 0, 0, 1, 1, 2], [0], [0]>} : vector<1x12x4xf32>, vector<1x4x256xf32>, vector<1x12x256xf32> -> vector<1x12x256xf32>
    "tpu.trace_stop"() : () -> ()
    %4 = vector.extract_strided_slice %3 {offsets = [0, 0, 0], sizes = [1, 12, 16], strides = [1, 1, 1]} : vector<1x12x256xf32> to vector<1x12x16xf32>
    %c0_4 = arith.constant 0 : index
    %c0_5 = arith.constant 0 : index
    %c0_6 = arith.constant 0 : index
    %c0_7 = arith.constant 0 : index
    %5 = vector.load %arg4[%c0_4, %c0_5, %c0_6, %c0_7] : memref<1x12x16x16xf32, #tpu.memory_space<vmem>>, vector<1x12x1x16xf32>
    %6 = vector.shape_cast %5 : vector<1x12x1x16xf32> to vector<1x12x16xf32>
    %7 = vector.shape_cast %4 : vector<1x12x16xf32> to vector<1x12x1x16xf32>
    tpu.vector_store %arg4[%c0_4, %c0_5, %c0_6, %c0_7], %7 {strides = array<i32>} : memref<1x12x16x16xf32, #tpu.memory_space<vmem>>, vector<1x12x1x16xf32>,
    %8 = vector.extract_strided_slice %3 {offsets = [0, 0, 16], sizes = [1, 12, 16], strides = [1, 1, 1]} : vector<1x12x256xf32> to vector<1x12x16xf32>
    %c0_8 = arith.constant 0 : index
    %c0_9 = arith.constant 0 : index
    %c1 = arith.constant 1 : index
    %c0_10 = arith.constant 0 : index
    %9 = vector.load %arg4[%c0_8, %c0_9, %c1, %c0_10] : memref<1x12x16x16xf32, #tpu.memory_space<vmem>>, vector<1x12x1x16xf32>
    %10 = vector.shape_cast %9 : vector<1x12x1x16xf32> to vector<1x12x16xf32>
    %11 = vector.shape_cast %8 : vector<1x12x16xf32> to vector<1x12x1x16xf32>
    tpu.vector_store %arg4[%c0_8, %c0_9, %c1, %c0_10], %11 {strides = array<i32>} : memref<1x12x16x16xf32, #tpu.memory_space<vmem>>, vector<1x12x1x16xf32>,
    %12 = vector.extract_strided_slice %3 {offsets = [0, 0, 32], sizes = [1, 12, 16], strides = [1, 1, 1]} : vector<1x12x256xf32> to vector<1x12x16xf32>
    %c0_11 = arith.constant 0 : index
    %c0_12 = arith.constant 0 : index
    %c2 = arith.constant 2 : index
    %c0_13 = arith.constant 0 : index
    %13 = vector.load %arg4[%c0_11, %c0_12, %c2, %c0_13] : memref<1x12x16x16xf32, #tpu.memory_space<vmem>>, vector<1x12x1x16xf32>
    %14 = vector.shape_cast %13 : vector<1x12x1x16xf32> to vector<1x12x16xf32>
    %15 = vector.shape_cast %12 : vector<1x12x16xf32> to vector<1x12x1x16xf32>
    tpu.vector_store %arg4[%c0_11, %c0_12, %c2, %c0_13], %15 {strides = array<i32>} : memref<1x12x16x16xf32, #tpu.memory_space<vmem>>, vector<1x12x1x16xf32>,
    %16 = vector.extract_strided_slice %3 {offsets = [0, 0, 48], sizes = [1, 12, 16], strides = [1, 1, 1]} : vector<1x12x256xf32> to vector<1x12x16xf32>
    %c0_14 = arith.constant 0 : index
    %c0_15 = arith.constant 0 : index
    %c3 = arith.constant 3 : index
    %c0_16 = arith.constant 0 : index
    %17 = vector.load %arg4[%c0_14, %c0_15, %c3, %c0_16] : memref<1x12x16x16xf32, #tpu.memory_space<vmem>>, vector<1x12x1x16xf32>
    %18 = vector.shape_cast %17 : vector<1x12x1x16xf32> to vector<1x12x16xf32>
    %19 = vector.shape_cast %16 : vector<1x12x16xf32> to vector<1x12x1x16xf32>
    tpu.vector_store %arg4[%c0_14, %c0_15, %c3, %c0_16], %19 {strides = array<i32>} : memref<1x12x16x16xf32, #tpu.memory_space<vmem>>, vector<1x12x1x16xf32>,
    %20 = vector.extract_strided_slice %3 {offsets = [0, 0, 64], sizes = [1, 12, 16], strides = [1, 1, 1]} : vector<1x12x256xf32> to vector<1x12x16xf32>
    %c0_17 = arith.constant 0 : index
    %c0_18 = arith.constant 0 : index
    %c4 = arith.constant 4 : index
    %c0_19 = arith.constant 0 : index
    %21 = vector.load %arg4[%c0_17, %c0_18, %c4, %c0_19] : memref<1x12x16x16xf32, #tpu.memory_space<vmem>>, vector<1x12x1x16xf32>
    %22 = vector.shape_cast %21 : vector<1x12x1x16xf32> to vector<1x12x16xf32>
    %23 = vector.shape_cast %20 : vector<1x12x16xf32> to vector<1x12x1x16xf32>
    tpu.vector_store %arg4[%c0_17, %c0_18, %c4, %c0_19], %23 {strides = array<i32>} : memref<1x12x16x16xf32, #tpu.memory_space<vmem>>, vector<1x12x1x16xf32>,
    %24 = vector.extract_strided_slice %3 {offsets = [0, 0, 80], sizes = [1, 12, 16], strides = [1, 1, 1]} : vector<1x12x256xf32> to vector<1x12x16xf32>
    %c0_20 = arith.constant 0 : index
    %c0_21 = arith.constant 0 : index
    %c5 = arith.constant 5 : index
    %c0_22 = arith.constant 0 : index
    %25 = vector.load %arg4[%c0_20, %c0_21, %c5, %c0_22] : memref<1x12x16x16xf32, #tpu.memory_space<vmem>>, vector<1x12x1x16xf32>
    %26 = vector.shape_cast %25 : vector<1x12x1x16xf32> to vector<1x12x16xf32>
    %27 = vector.shape_cast %24 : vector<1x12x16xf32> to vector<1x12x1x16xf32>
    tpu.vector_store %arg4[%c0_20, %c0_21, %c5, %c0_22], %27 {strides = array<i32>} : memref<1x12x16x16xf32, #tpu.memory_space<vmem>>, vector<1x12x1x16xf32>,
    %28 = vector.extract_strided_slice %3 {offsets = [0, 0, 96], sizes = [1, 12, 16], strides = [1, 1, 1]} : vector<1x12x256xf32> to vector<1x12x16xf32>
    %c0_23 = arith.constant 0 : index
    %c0_24 = arith.constant 0 : index
    %c6 = arith.constant 6 : index
    %c0_25 = arith.constant 0 : index
    %29 = vector.load %arg4[%c0_23, %c0_24, %c6, %c0_25] : memref<1x12x16x16xf32, #tpu.memory_space<vmem>>, vector<1x12x1x16xf32>
    %30 = vector.shape_cast %29 : vector<1x12x1x16xf32> to vector<1x12x16xf32>
    %31 = vector.shape_cast %28 : vector<1x12x16xf32> to vector<1x12x1x16xf32>
    tpu.vector_store %arg4[%c0_23, %c0_24, %c6, %c0_25], %31 {strides = array<i32>} : memref<1x12x16x16xf32, #tpu.memory_space<vmem>>, vector<1x12x1x16xf32>,
    %32 = vector.extract_strided_slice %3 {offsets = [0, 0, 112], sizes = [1, 12, 16], strides = [1, 1, 1]} : vector<1x12x256xf32> to vector<1x12x16xf32>
    %c0_26 = arith.constant 0 : index
    %c0_27 = arith.constant 0 : index
    %c7 = arith.constant 7 : index
    %c0_28 = arith.constant 0 : index
    %33 = vector.load %arg4[%c0_26, %c0_27, %c7, %c0_28] : memref<1x12x16x16xf32, #tpu.memory_space<vmem>>, vector<1x12x1x16xf32>
    %34 = vector.shape_cast %33 : vector<1x12x1x16xf32> to vector<1x12x16xf32>
    %35 = vector.shape_cast %32 : vector<1x12x16xf32> to vector<1x12x1x16xf32>
    tpu.vector_store %arg4[%c0_26, %c0_27, %c7, %c0_28], %35 {strides = array<i32>} : memref<1x12x16x16xf32, #tpu.memory_space<vmem>>, vector<1x12x1x16xf32>,
    %36 = vector.extract_strided_slice %3 {offsets = [0, 0, 128], sizes = [1, 12, 16], strides = [1, 1, 1]} : vector<1x12x256xf32> to vector<1x12x16xf32>
    %c0_29 = arith.constant 0 : index
    %c0_30 = arith.constant 0 : index
    %c8 = arith.constant 8 : index
    %c0_31 = arith.constant 0 : index
    %37 = vector.load %arg4[%c0_29, %c0_30, %c8, %c0_31] : memref<1x12x16x16xf32, #tpu.memory_space<vmem>>, vector<1x12x1x16xf32>
    %38 = vector.shape_cast %37 : vector<1x12x1x16xf32> to vector<1x12x16xf32>
    %39 = vector.shape_cast %36 : vector<1x12x16xf32> to vector<1x12x1x16xf32>
    tpu.vector_store %arg4[%c0_29, %c0_30, %c8, %c0_31], %39 {strides = array<i32>} : memref<1x12x16x16xf32, #tpu.memory_space<vmem>>, vector<1x12x1x16xf32>,
    %40 = vector.extract_strided_slice %3 {offsets = [0, 0, 144], sizes = [1, 12, 16], strides = [1, 1, 1]} : vector<1x12x256xf32> to vector<1x12x16xf32>
    %c0_32 = arith.constant 0 : index
    %c0_33 = arith.constant 0 : index
    %c9 = arith.constant 9 : index
    %c0_34 = arith.constant 0 : index
    %41 = vector.load %arg4[%c0_32, %c0_33, %c9, %c0_34] : memref<1x12x16x16xf32, #tpu.memory_space<vmem>>, vector<1x12x1x16xf32>
    %42 = vector.shape_cast %41 : vector<1x12x1x16xf32> to vector<1x12x16xf32>
    %43 = vector.shape_cast %40 : vector<1x12x16xf32> to vector<1x12x1x16xf32>
    tpu.vector_store %arg4[%c0_32, %c0_33, %c9, %c0_34], %43 {strides = array<i32>} : memref<1x12x16x16xf32, #tpu.memory_space<vmem>>, vector<1x12x1x16xf32>,
    %44 = vector.extract_strided_slice %3 {offsets = [0, 0, 160], sizes = [1, 12, 16], strides = [1, 1, 1]} : vector<1x12x256xf32> to vector<1x12x16xf32>
    %c0_35 = arith.constant 0 : index
    %c0_36 = arith.constant 0 : index
    %c10 = arith.constant 10 : index
    %c0_37 = arith.constant 0 : index
    %45 = vector.load %arg4[%c0_35, %c0_36, %c10, %c0_37] : memref<1x12x16x16xf32, #tpu.memory_space<vmem>>, vector<1x12x1x16xf32>
    %46 = vector.shape_cast %45 : vector<1x12x1x16xf32> to vector<1x12x16xf32>
    %47 = vector.shape_cast %44 : vector<1x12x16xf32> to vector<1x12x1x16xf32>
    tpu.vector_store %arg4[%c0_35, %c0_36, %c10, %c0_37], %47 {strides = array<i32>} : memref<1x12x16x16xf32, #tpu.memory_space<vmem>>, vector<1x12x1x16xf32>,
    %48 = vector.extract_strided_slice %3 {offsets = [0, 0, 176], sizes = [1, 12, 16], strides = [1, 1, 1]} : vector<1x12x256xf32> to vector<1x12x16xf32>
    %c0_38 = arith.constant 0 : index
    %c0_39 = arith.constant 0 : index
    %c11 = arith.constant 11 : index
    %c0_40 = arith.constant 0 : index
    %49 = vector.load %arg4[%c0_38, %c0_39, %c11, %c0_40] : memref<1x12x16x16xf32, #tpu.memory_space<vmem>>, vector<1x12x1x16xf32>
    %50 = vector.shape_cast %49 : vector<1x12x1x16xf32> to vector<1x12x16xf32>
    %51 = vector.shape_cast %48 : vector<1x12x16xf32> to vector<1x12x1x16xf32>
    tpu.vector_store %arg4[%c0_38, %c0_39, %c11, %c0_40], %51 {strides = array<i32>} : memref<1x12x16x16xf32, #tpu.memory_space<vmem>>, vector<1x12x1x16xf32>,
    %52 = vector.extract_strided_slice %3 {offsets = [0, 0, 192], sizes = [1, 12, 16], strides = [1, 1, 1]} : vector<1x12x256xf32> to vector<1x12x16xf32>
    %c0_41 = arith.constant 0 : index
    %c0_42 = arith.constant 0 : index
    %c12 = arith.constant 12 : index
    %c0_43 = arith.constant 0 : index
    %53 = vector.load %arg4[%c0_41, %c0_42, %c12, %c0_43] : memref<1x12x16x16xf32, #tpu.memory_space<vmem>>, vector<1x12x1x16xf32>
    %54 = vector.shape_cast %53 : vector<1x12x1x16xf32> to vector<1x12x16xf32>
    %55 = vector.shape_cast %52 : vector<1x12x16xf32> to vector<1x12x1x16xf32>
    tpu.vector_store %arg4[%c0_41, %c0_42, %c12, %c0_43], %55 {strides = array<i32>} : memref<1x12x16x16xf32, #tpu.memory_space<vmem>>, vector<1x12x1x16xf32>,
    %56 = vector.extract_strided_slice %3 {offsets = [0, 0, 208], sizes = [1, 12, 16], strides = [1, 1, 1]} : vector<1x12x256xf32> to vector<1x12x16xf32>
    %c0_44 = arith.constant 0 : index
    %c0_45 = arith.constant 0 : index
    %c13 = arith.constant 13 : index
    %c0_46 = arith.constant 0 : index
    %57 = vector.load %arg4[%c0_44, %c0_45, %c13, %c0_46] : memref<1x12x16x16xf32, #tpu.memory_space<vmem>>, vector<1x12x1x16xf32>
    %58 = vector.shape_cast %57 : vector<1x12x1x16xf32> to vector<1x12x16xf32>
    %59 = vector.shape_cast %56 : vector<1x12x16xf32> to vector<1x12x1x16xf32>
    tpu.vector_store %arg4[%c0_44, %c0_45, %c13, %c0_46], %59 {strides = array<i32>} : memref<1x12x16x16xf32, #tpu.memory_space<vmem>>, vector<1x12x1x16xf32>,
    %60 = vector.extract_strided_slice %3 {offsets = [0, 0, 224], sizes = [1, 12, 16], strides = [1, 1, 1]} : vector<1x12x256xf32> to vector<1x12x16xf32>
    %c0_47 = arith.constant 0 : index
    %c0_48 = arith.constant 0 : index
    %c14 = arith.constant 14 : index
    %c0_49 = arith.constant 0 : index
    %61 = vector.load %arg4[%c0_47, %c0_48, %c14, %c0_49] : memref<1x12x16x16xf32, #tpu.memory_space<vmem>>, vector<1x12x1x16xf32>
    %62 = vector.shape_cast %61 : vector<1x12x1x16xf32> to vector<1x12x16xf32>
    %63 = vector.shape_cast %60 : vector<1x12x16xf32> to vector<1x12x1x16xf32>
    tpu.vector_store %arg4[%c0_47, %c0_48, %c14, %c0_49], %63 {strides = array<i32>} : memref<1x12x16x16xf32, #tpu.memory_space<vmem>>, vector<1x12x1x16xf32>,
    %64 = vector.extract_strided_slice %3 {offsets = [0, 0, 240], sizes = [1, 12, 16], strides = [1, 1, 1]} : vector<1x12x256xf32> to vector<1x12x16xf32>
    %c0_50 = arith.constant 0 : index
    %c0_51 = arith.constant 0 : index
    %c15 = arith.constant 15 : index
    %c0_52 = arith.constant 0 : index
    %65 = vector.load %arg4[%c0_50, %c0_51, %c15, %c0_52] : memref<1x12x16x16xf32, #tpu.memory_space<vmem>>, vector<1x12x1x16xf32>
    %66 = vector.shape_cast %65 : vector<1x12x1x16xf32> to vector<1x12x16xf32>
    %67 = vector.shape_cast %64 : vector<1x12x16xf32> to vector<1x12x1x16xf32>
    tpu.vector_store %arg4[%c0_50, %c0_51, %c15, %c0_52], %67 {strides = array<i32>} : memref<1x12x16x16xf32, #tpu.memory_space<vmem>>, vector<1x12x1x16xf32>,
    %c0_53 = arith.constant 0 : index
    %c0_54 = arith.constant 0 : index
    %c0_55 = arith.constant 0 : index
    %c0_56 = arith.constant 0 : index
    %68 = vector.load %arg4[%c0_53, %c0_54, %c0_55, %c0_56] : memref<1x12x16x16xf32, #tpu.memory_space<vmem>>, vector<1x4x16x16xf32>
    %69 = vector.shape_cast %68 : vector<1x4x16x16xf32> to vector<4x16x16xf32>
    %70 = arith.truncf %69 : vector<4x16x16xf32> to vector<4x16x16xbf16>
    %c0_57 = arith.constant 0 : index
    %c4_58 = arith.constant 4 : index
    %c0_59 = arith.constant 0 : index
    %c0_60 = arith.constant 0 : index
    %71 = vector.load %arg4[%c0_57, %c4_58, %c0_59, %c0_60] : memref<1x12x16x16xf32, #tpu.memory_space<vmem>>, vector<1x4x16x16xf32>
    %72 = vector.shape_cast %71 : vector<1x4x16x16xf32> to vector<4x16x16xf32>
    %73 = arith.truncf %72 : vector<4x16x16xf32> to vector<4x16x16xbf16>
    %c0_61 = arith.constant 0 : index
    %c8_62 = arith.constant 8 : index
    %c0_63 = arith.constant 0 : index
    %c0_64 = arith.constant 0 : index
    %74 = vector.load %arg4[%c0_61, %c8_62, %c0_63, %c0_64] : memref<1x12x16x16xf32, #tpu.memory_space<vmem>>, vector<1x4x16x16xf32>
    %75 = vector.shape_cast %74 : vector<1x4x16x16xf32> to vector<4x16x16xf32>
    %76 = arith.truncf %75 : vector<4x16x16xf32> to vector<4x16x16xbf16>
    "tpu.trace_start"() <{level = 10 : i32, message = "zhw,zwk->zhk"}> : () -> ()
    %cst_65 = arith.constant dense<0.000000e+00> : vector<4x16x16xf32>
    %77 = tpu.matmul %70, %73, %cst_65 {dimension_numbers = #tpu.dot_dimension_numbers<[2], [1], [1], [2], [0, 0, 0, 1, 1, 2], [0], [0]>} : vector<4x16x16xbf16>, vector<4x16x16xbf16>, vector<4x16x16xf32> -> vector<4x16x16xf32>
    "tpu.trace_stop"() : () -> ()
    %78 = vector.shape_cast %77 : vector<4x16x16xf32> to vector<1x4x16x16xf32>
    %cst_66 = arith.constant dense<0xFF800000> : vector<1x16x16xf32>
    %79 = vector.multi_reduction <maximumf>, %78, %cst_66 [1] : vector<1x4x16x16xf32> to vector<1x16x16xf32>
    %80 = vector.shape_cast %79 : vector<1x16x16xf32> to vector<1x1x16x16xf32>
    %81 = vector.broadcast %80 : vector<1x1x16x16xf32> to vector<1x4x16x16xf32>
    %82 = arith.subf %78, %81 : vector<1x4x16x16xf32>
    %83 = math.exp %82 : vector<1x4x16x16xf32>
    %cst_67 = arith.constant dense<0.000000e+00> : vector<1x16x16xf32>
    %84 = vector.multi_reduction <add>, %83, %cst_67 [1] : vector<1x4x16x16xf32> to vector<1x16x16xf32>
    %85 = vector.shape_cast %84 : vector<1x16x16xf32> to vector<1x1x16x16xf32>
    %86 = tpu.reciprocal %85 : vector<1x1x16x16xf32> -> vector<1x1x16x16xf32>
    %87 = vector.broadcast %86 : vector<1x1x16x16xf32> to vector<1x4x16x16xf32>
    %88 = arith.mulf %83, %87 : vector<1x4x16x16xf32>
    %89 = arith.truncf %88 : vector<1x4x16x16xf32> to vector<1x4x16x16xbf16>
    %90 = vector.shape_cast %89 : vector<1x4x16x16xbf16> to vector<4x16x16xbf16>
    "tpu.trace_start"() <{level = 10 : i32, message = "zhw,zwk->zhk"}> : () -> ()
    %cst_68 = arith.constant dense<0.000000e+00> : vector<4x16x16xf32>
    %91 = tpu.matmul %76, %90, %cst_68 {dimension_numbers = #tpu.dot_dimension_numbers<[2], [1], [1], [2], [0, 0, 0, 1, 1, 2], [0], [0]>} : vector<4x16x16xbf16>, vector<4x16x16xbf16>, vector<4x16x16xf32> -> vector<4x16x16xf32>
    "tpu.trace_stop"() : () -> ()
    %92 = vector.shape_cast %91 : vector<4x16x16xf32> to vector<1x4x16x16xf32>
    %93 = vector.extract_strided_slice %92 {offsets = [0, 0, 0, 0], sizes = [1, 4, 1, 16], strides = [1, 1, 1, 1]} : vector<1x4x16x16xf32> to vector<1x4x1x16xf32>
    %94 = vector.shape_cast %93 : vector<1x4x1x16xf32> to vector<1x4x16xf32>
    %c0_69 = arith.constant 0 : index
    %c0_70 = arith.constant 0 : index
    %c0_71 = arith.constant 0 : index
    %95 = vector.load %arg5[%c0_69, %c0_70, %c0_71] : memref<1x4x256xf32, #tpu.memory_space<vmem>>, vector<1x4x16xf32>
    tpu.vector_store %arg5[%c0_69, %c0_70, %c0_71], %94 {strides = array<i32>} : memref<1x4x256xf32, #tpu.memory_space<vmem>>, vector<1x4x16xf32>,
    %96 = vector.extract_strided_slice %92 {offsets = [0, 0, 1, 0], sizes = [1, 4, 1, 16], strides = [1, 1, 1, 1]} : vector<1x4x16x16xf32> to vector<1x4x1x16xf32>
    %97 = vector.shape_cast %96 : vector<1x4x1x16xf32> to vector<1x4x16xf32>
    %c0_72 = arith.constant 0 : index
    %c0_73 = arith.constant 0 : index
    %c16 = arith.constant 16 : index
    %98 = vector.load %arg5[%c0_72, %c0_73, %c16] : memref<1x4x256xf32, #tpu.memory_space<vmem>>, vector<1x4x16xf32>
    tpu.vector_store %arg5[%c0_72, %c0_73, %c16], %97 {strides = array<i32>} : memref<1x4x256xf32, #tpu.memory_space<vmem>>, vector<1x4x16xf32>,
    %99 = vector.extract_strided_slice %92 {offsets = [0, 0, 2, 0], sizes = [1, 4, 1, 16], strides = [1, 1, 1, 1]} : vector<1x4x16x16xf32> to vector<1x4x1x16xf32>
    %100 = vector.shape_cast %99 : vector<1x4x1x16xf32> to vector<1x4x16xf32>
    %c0_74 = arith.constant 0 : index
    %c0_75 = arith.constant 0 : index
    %c32 = arith.constant 32 : index
    %101 = vector.load %arg5[%c0_74, %c0_75, %c32] : memref<1x4x256xf32, #tpu.memory_space<vmem>>, vector<1x4x16xf32>
    tpu.vector_store %arg5[%c0_74, %c0_75, %c32], %100 {strides = array<i32>} : memref<1x4x256xf32, #tpu.memory_space<vmem>>, vector<1x4x16xf32>,
    %102 = vector.extract_strided_slice %92 {offsets = [0, 0, 3, 0], sizes = [1, 4, 1, 16], strides = [1, 1, 1, 1]} : vector<1x4x16x16xf32> to vector<1x4x1x16xf32>
    %103 = vector.shape_cast %102 : vector<1x4x1x16xf32> to vector<1x4x16xf32>
    %c0_76 = arith.constant 0 : index
    %c0_77 = arith.constant 0 : index
    %c48 = arith.constant 48 : index
    %104 = vector.load %arg5[%c0_76, %c0_77, %c48] : memref<1x4x256xf32, #tpu.memory_space<vmem>>, vector<1x4x16xf32>
    tpu.vector_store %arg5[%c0_76, %c0_77, %c48], %103 {strides = array<i32>} : memref<1x4x256xf32, #tpu.memory_space<vmem>>, vector<1x4x16xf32>,
    %105 = vector.extract_strided_slice %92 {offsets = [0, 0, 4, 0], sizes = [1, 4, 1, 16], strides = [1, 1, 1, 1]} : vector<1x4x16x16xf32> to vector<1x4x1x16xf32>
    %106 = vector.shape_cast %105 : vector<1x4x1x16xf32> to vector<1x4x16xf32>
    %c0_78 = arith.constant 0 : index
    %c0_79 = arith.constant 0 : index
    %c64 = arith.constant 64 : index
    %107 = vector.load %arg5[%c0_78, %c0_79, %c64] : memref<1x4x256xf32, #tpu.memory_space<vmem>>, vector<1x4x16xf32>
    tpu.vector_store %arg5[%c0_78, %c0_79, %c64], %106 {strides = array<i32>} : memref<1x4x256xf32, #tpu.memory_space<vmem>>, vector<1x4x16xf32>,
    %108 = vector.extract_strided_slice %92 {offsets = [0, 0, 5, 0], sizes = [1, 4, 1, 16], strides = [1, 1, 1, 1]} : vector<1x4x16x16xf32> to vector<1x4x1x16xf32>
    %109 = vector.shape_cast %108 : vector<1x4x1x16xf32> to vector<1x4x16xf32>
    %c0_80 = arith.constant 0 : index
    %c0_81 = arith.constant 0 : index
    %c80 = arith.constant 80 : index
    %110 = vector.load %arg5[%c0_80, %c0_81, %c80] : memref<1x4x256xf32, #tpu.memory_space<vmem>>, vector<1x4x16xf32>
    tpu.vector_store %arg5[%c0_80, %c0_81, %c80], %109 {strides = array<i32>} : memref<1x4x256xf32, #tpu.memory_space<vmem>>, vector<1x4x16xf32>,
    %111 = vector.extract_strided_slice %92 {offsets = [0, 0, 6, 0], sizes = [1, 4, 1, 16], strides = [1, 1, 1, 1]} : vector<1x4x16x16xf32> to vector<1x4x1x16xf32>
    %112 = vector.shape_cast %111 : vector<1x4x1x16xf32> to vector<1x4x16xf32>
    %c0_82 = arith.constant 0 : index
    %c0_83 = arith.constant 0 : index
    %c96 = arith.constant 96 : index
    %113 = vector.load %arg5[%c0_82, %c0_83, %c96] : memref<1x4x256xf32, #tpu.memory_space<vmem>>, vector<1x4x16xf32>
    tpu.vector_store %arg5[%c0_82, %c0_83, %c96], %112 {strides = array<i32>} : memref<1x4x256xf32, #tpu.memory_space<vmem>>, vector<1x4x16xf32>,
    %114 = vector.extract_strided_slice %92 {offsets = [0, 0, 7, 0], sizes = [1, 4, 1, 16], strides = [1, 1, 1, 1]} : vector<1x4x16x16xf32> to vector<1x4x1x16xf32>
    %115 = vector.shape_cast %114 : vector<1x4x1x16xf32> to vector<1x4x16xf32>
    %c0_84 = arith.constant 0 : index
    %c0_85 = arith.constant 0 : index
    %c112 = arith.constant 112 : index
    %116 = vector.load %arg5[%c0_84, %c0_85, %c112] : memref<1x4x256xf32, #tpu.memory_space<vmem>>, vector<1x4x16xf32>
    tpu.vector_store %arg5[%c0_84, %c0_85, %c112], %115 {strides = array<i32>} : memref<1x4x256xf32, #tpu.memory_space<vmem>>, vector<1x4x16xf32>,
    %117 = vector.extract_strided_slice %92 {offsets = [0, 0, 8, 0], sizes = [1, 4, 1, 16], strides = [1, 1, 1, 1]} : vector<1x4x16x16xf32> to vector<1x4x1x16xf32>
    %118 = vector.shape_cast %117 : vector<1x4x1x16xf32> to vector<1x4x16xf32>
    %c0_86 = arith.constant 0 : index
    %c0_87 = arith.constant 0 : index
    %c128 = arith.constant 128 : index
    %119 = vector.load %arg5[%c0_86, %c0_87, %c128] : memref<1x4x256xf32, #tpu.memory_space<vmem>>, vector<1x4x16xf32>
    tpu.vector_store %arg5[%c0_86, %c0_87, %c128], %118 {strides = array<i32>} : memref<1x4x256xf32, #tpu.memory_space<vmem>>, vector<1x4x16xf32>,
    %120 = vector.extract_strided_slice %92 {offsets = [0, 0, 9, 0], sizes = [1, 4, 1, 16], strides = [1, 1, 1, 1]} : vector<1x4x16x16xf32> to vector<1x4x1x16xf32>
    %121 = vector.shape_cast %120 : vector<1x4x1x16xf32> to vector<1x4x16xf32>
    %c0_88 = arith.constant 0 : index
    %c0_89 = arith.constant 0 : index
    %c144 = arith.constant 144 : index
    %122 = vector.load %arg5[%c0_88, %c0_89, %c144] : memref<1x4x256xf32, #tpu.memory_space<vmem>>, vector<1x4x16xf32>
    tpu.vector_store %arg5[%c0_88, %c0_89, %c144], %121 {strides = array<i32>} : memref<1x4x256xf32, #tpu.memory_space<vmem>>, vector<1x4x16xf32>,
    %123 = vector.extract_strided_slice %92 {offsets = [0, 0, 10, 0], sizes = [1, 4, 1, 16], strides = [1, 1, 1, 1]} : vector<1x4x16x16xf32> to vector<1x4x1x16xf32>
    %124 = vector.shape_cast %123 : vector<1x4x1x16xf32> to vector<1x4x16xf32>
    %c0_90 = arith.constant 0 : index
    %c0_91 = arith.constant 0 : index
    %c160 = arith.constant 160 : index
    %125 = vector.load %arg5[%c0_90, %c0_91, %c160] : memref<1x4x256xf32, #tpu.memory_space<vmem>>, vector<1x4x16xf32>
    tpu.vector_store %arg5[%c0_90, %c0_91, %c160], %124 {strides = array<i32>} : memref<1x4x256xf32, #tpu.memory_space<vmem>>, vector<1x4x16xf32>,
    %126 = vector.extract_strided_slice %92 {offsets = [0, 0, 11, 0], sizes = [1, 4, 1, 16], strides = [1, 1, 1, 1]} : vector<1x4x16x16xf32> to vector<1x4x1x16xf32>
    %127 = vector.shape_cast %126 : vector<1x4x1x16xf32> to vector<1x4x16xf32>
    %c0_92 = arith.constant 0 : index
    %c0_93 = arith.constant 0 : index
    %c176 = arith.constant 176 : index
    %128 = vector.load %arg5[%c0_92, %c0_93, %c176] : memref<1x4x256xf32, #tpu.memory_space<vmem>>, vector<1x4x16xf32>
    tpu.vector_store %arg5[%c0_92, %c0_93, %c176], %127 {strides = array<i32>} : memref<1x4x256xf32, #tpu.memory_space<vmem>>, vector<1x4x16xf32>,
    %129 = vector.extract_strided_slice %92 {offsets = [0, 0, 12, 0], sizes = [1, 4, 1, 16], strides = [1, 1, 1, 1]} : vector<1x4x16x16xf32> to vector<1x4x1x16xf32>
    %130 = vector.shape_cast %129 : vector<1x4x1x16xf32> to vector<1x4x16xf32>
    %c0_94 = arith.constant 0 : index
    %c0_95 = arith.constant 0 : index
    %c192 = arith.constant 192 : index
    %131 = vector.load %arg5[%c0_94, %c0_95, %c192] : memref<1x4x256xf32, #tpu.memory_space<vmem>>, vector<1x4x16xf32>
    tpu.vector_store %arg5[%c0_94, %c0_95, %c192], %130 {strides = array<i32>} : memref<1x4x256xf32, #tpu.memory_space<vmem>>, vector<1x4x16xf32>,
    %132 = vector.extract_strided_slice %92 {offsets = [0, 0, 13, 0], sizes = [1, 4, 1, 16], strides = [1, 1, 1, 1]} : vector<1x4x16x16xf32> to vector<1x4x1x16xf32>
    %133 = vector.shape_cast %132 : vector<1x4x1x16xf32> to vector<1x4x16xf32>
    %c0_96 = arith.constant 0 : index
    %c0_97 = arith.constant 0 : index
    %c208 = arith.constant 208 : index
    %134 = vector.load %arg5[%c0_96, %c0_97, %c208] : memref<1x4x256xf32, #tpu.memory_space<vmem>>, vector<1x4x16xf32>
    tpu.vector_store %arg5[%c0_96, %c0_97, %c208], %133 {strides = array<i32>} : memref<1x4x256xf32, #tpu.memory_space<vmem>>, vector<1x4x16xf32>,
    %135 = vector.extract_strided_slice %92 {offsets = [0, 0, 14, 0], sizes = [1, 4, 1, 16], strides = [1, 1, 1, 1]} : vector<1x4x16x16xf32> to vector<1x4x1x16xf32>
    %136 = vector.shape_cast %135 : vector<1x4x1x16xf32> to vector<1x4x16xf32>
    %c0_98 = arith.constant 0 : index
    %c0_99 = arith.constant 0 : index
    %c224 = arith.constant 224 : index
    %137 = vector.load %arg5[%c0_98, %c0_99, %c224] : memref<1x4x256xf32, #tpu.memory_space<vmem>>, vector<1x4x16xf32>
    tpu.vector_store %arg5[%c0_98, %c0_99, %c224], %136 {strides = array<i32>} : memref<1x4x256xf32, #tpu.memory_space<vmem>>, vector<1x4x16xf32>,
    %138 = vector.extract_strided_slice %92 {offsets = [0, 0, 15, 0], sizes = [1, 4, 1, 16], strides = [1, 1, 1, 1]} : vector<1x4x16x16xf32> to vector<1x4x1x16xf32>
    %139 = vector.shape_cast %138 : vector<1x4x1x16xf32> to vector<1x4x16xf32>
    %c0_100 = arith.constant 0 : index
    %c0_101 = arith.constant 0 : index
    %c240 = arith.constant 240 : index
    %140 = vector.load %arg5[%c0_100, %c0_101, %c240] : memref<1x4x256xf32, #tpu.memory_space<vmem>>, vector<1x4x16xf32>
    tpu.vector_store %arg5[%c0_100, %c0_101, %c240], %139 {strides = array<i32>} : memref<1x4x256xf32, #tpu.memory_space<vmem>>, vector<1x4x16xf32>,
    %c0_102 = arith.constant 0 : index
    %c0_103 = arith.constant 0 : index
    %c0_104 = arith.constant 0 : index
    %141 = vector.load %arg5[%c0_102, %c0_103, %c0_104] : memref<1x4x256xf32, #tpu.memory_space<vmem>>, vector<1x4x256xf32>
    %142 = arith.addf %0, %141 : vector<1x4x256xf32>
    %c0_105 = arith.constant 0 : index
    %c0_106 = arith.constant 0 : index
    %c0_107 = arith.constant 0 : index
    %143 = vector.load %arg3[%c0_105, %c0_106, %c0_107] : memref<1x4x256xf32, #tpu.memory_space<vmem>>, vector<1x4x256xf32>
    tpu.vector_store %arg3[%c0_105, %c0_106, %c0_107], %142 {strides = array<i32>} : memref<1x4x256xf32, #tpu.memory_space<vmem>>, vector<1x4x256xf32>,
    return
  }
  func.func @transform_0(%arg0: i32) -> (i32, i32) {
    %c0_i32 = arith.constant 0 : i32
    %c0_i32_0 = arith.constant 0 : i32
    %c0_i32_1 = arith.constant 0 : i32
    return %c0_i32, %c0_i32_0 : i32, i32
  }
  func.func @transform_1(%arg0: i32) -> (i32, i32, i32) {
    %c0_i32 = arith.constant 0 : i32
    %c0_i32_0 = arith.constant 0 : i32
    %c0_i32_1 = arith.constant 0 : i32
    return %arg0, %c0_i32, %c0_i32_0 : i32, i32, i32
  }
  func.func @transform_2(%arg0: i32) -> (i32, i32, i32) {
    %c0_i32 = arith.constant 0 : i32
    %c0_i32_0 = arith.constant 0 : i32
    %c0_i32_1 = arith.constant 0 : i32
    return %arg0, %c0_i32, %c0_i32_0 : i32, i32, i32
  }
}

</mosaic_0001>

<llo_original>
// kernel: attention_forward.1
$region0: #{attention_forward.1}
  #allocation0 [shape = 'u32[]', space=smem, size = 0x4, offset = 0x4, fixed_abs, tag = 'smem constant byte address 0x4 - core index']
  #allocation1 [shape = 'u32[72,128]{1,0:T(1,128)}', space=vmem, size = 0x9000, scoped, tag = 'internal scratch']
  #allocation2 [shape = 'f32[1,12,16,16]{3,2,1,0:T(8,128)}', space=vmem, size = 0x18000, scoped, tag = 'scratch operand']
  #allocation3 [shape = 'f32[1,4,256]{2,1,0:T(4,128)}', space=vmem, size = 0x1000, scoped, tag = 'scratch operand']
  %s0 = inlined_call_operand.vmem [shape: f32[12,4], index: 0, kind: input, shape index: {}]
  %s1 = inlined_call_operand.vmem [shape: f32[2,4,256], index: 1, kind: input, shape index: {}]
  %s2 = inlined_call_operand.vmem [shape: f32[2,4,256], index: 2, kind: output, shape index: {}]
  %s3 = sld [smem:[#allocation0]]
  $region41: #{attention_forward.1} parent=0
    _
  %s5 = ssub.s32 1, %s3
  %s6 = scalar_select 0, %s5, %s3
  loop: start=0, step=1, limit=4
  $region2: #{attention_forward.1} parent=0 // loop_pre_header
    _
  $region3: #{attention_forward.1} parent=0 // loop_header
    %s8 = sphi 0, %s12
    %p9 = scmp.ge.s32.totalorder %s8, 4
    %s16 = sphi 0, %s16
    %s18 = sphi 0, %s16
    %s19 = sphi 0, %s18
    %s33 = sphi 0, %s19
    %s39 = sphi 0, %s41
    %s42 = sphi 0, %s39
    %s43 = sphi 0, %s42
    %s59 = sphi 0, %s43
    %s65 = sphi 0, %s67
    %s68 = sphi 0, %s65
    %s69 = sphi 0, %s68
    %s85 = sphi 0, %s69
  $region4: #{attention_forward.1} parent=0 // loop_header_branch
    %11 = sbr.rel (%p9) target = $region8
  $region5: #{attention_forward.1} parent=0 // loop_body
    %s13 = ssub.s32 %s8, 1
    %s14 = ssub.s32 %s8, 2
    %s15 = sadd.s32 %s8, 1
    %s17 = sadd.s32 %s16, 1
    %p20 = scmp.eq.s32.totalorder %s8, 1
    %p21 = scmp.ne.s32.totalorder %s16, %s18
    %p22 = scmp.eq.s32.totalorder %s8, 0
    %p23 = por %p21, %p22
    %p24 = scmp.ne.s32.totalorder %s16, %s18
    %p25 = scmp.eq.s32.totalorder %s13, 1
    %p26 = por %p24, %p25
    %p27 = scmp.ne.s32.totalorder %s18, %s19
    %p28 = scmp.eq.s32.totalorder %s13, 0
    %p29 = por %p27, %p28
    %p30 = scmp.ne.s32.totalorder %s18, %s19
    %p31 = scmp.eq.s32.totalorder %s14, 1
    %p32 = por %p30, %p31
    %p34 = scmp.ne.s32.totalorder %s19, %s33
    %p35 = scmp.eq.s32.totalorder %s14, 0
    %p36 = por %p34, %p35
    %s37 = ssub.s32 %s8, %s15
    %p38 = scmp.eq.s32.totalorder %s37, 0
    %s40 = sadd.s32 %s39, 1
    %s41 = scalar_select %p38, %s39, %s40
    %p44 = pneg %p38
    %p45 = scmp.eq.s32.totalorder %s8, 1
    %p46 = por %p44, %p45
    %p47 = scmp.ne.s32.totalorder %s39, %s42
    %p48 = scmp.eq.s32.totalorder %s8, 0
    %p49 = por %p47, %p48
    %p50 = scmp.ne.s32.totalorder %s39, %s42
    %p51 = scmp.eq.s32.totalorder %s13, 1
    %p52 = por %p50, %p51
    %p53 = scmp.ne.s32.totalorder %s42, %s43
    %p54 = scmp.eq.s32.totalorder %s13, 0
    %p55 = por %p53, %p54
    %p56 = scmp.ne.s32.totalorder %s42, %s43
    %p57 = scmp.eq.s32.totalorder %s14, 1
    %p58 = por %p56, %p57
    %p60 = scmp.ne.s32.totalorder %s43, %s59
    %p61 = scmp.eq.s32.totalorder %s14, 0
    %p62 = por %p60, %p61
    %s63 = ssub.s32 %s8, %s15
    %p64 = scmp.eq.s32.totalorder %s63, 0
    %s66 = sadd.s32 %s65, 1
    %s67 = scalar_select %p64, %s65, %s66
    %p70 = pneg %p64
    %p71 = scmp.eq.s32.totalorder %s8, 1
    %p72 = por %p70, %p71
    %p73 = scmp.ne.s32.totalorder %s65, %s68
    %p74 = scmp.eq.s32.totalorder %s8, 0
    %p75 = por %p73, %p74
    %p76 = scmp.ne.s32.totalorder %s65, %s68
    %p77 = scmp.eq.s32.totalorder %s13, 1
    %p78 = por %p76, %p77
    %p79 = scmp.ne.s32.totalorder %s68, %s69
    %p80 = scmp.eq.s32.totalorder %s13, 0
    %p81 = por %p79, %p80
    %p82 = scmp.ne.s32.totalorder %s68, %s69
    %p83 = scmp.eq.s32.totalorder %s14, 1
    %p84 = por %p82, %p83
    %p86 = scmp.ne.s32.totalorder %s69, %s85
    %p87 = scmp.eq.s32.totalorder %s14, 0
    %p88 = por %p86, %p87
    %p89 = scmp.le.s32.totalorder 1, %s8
    %p90 = scmp.lt.s32.totalorder %s8, 3
    %p91 = pnand %p89, %p90
    %p92 = pneg %p91
    // Predicated region
    $region9: #{attention_forward.1} parent=5 // pred_check
      _
    $region10: #{attention_forward.1} parent=5 // pred_check_branch
      %94 = sbr.rel (%p91) target = $region12
    $region11: #{attention_forward.1} parent=5 // pred_region
      %s95 = ssub.s32 %s8, 1
      // Predicated region
      $region13: #{attention_forward.1} parent=11 // pred_check
        %p96 = pneg %p29
      $region14: #{attention_forward.1} parent=11 // pred_check_branch
        %98 = sbr.rel (%p96) target = $region16
      $region15: #{attention_forward.1} parent=11 // pred_region
        _
      $region16: #{attention_forward.1} parent=11 // pred_fallthru
        _
    $region12: #{attention_forward.1} parent=5 // pred_fallthru
      _
    %p99 = scmp.lt.s32.totalorder %s8, 2
    // Predicated region
    $region17: #{attention_forward.1} parent=5 // pred_check
      %p100 = pneg %p99
    $region18: #{attention_forward.1} parent=5 // pred_check_branch
      %102 = sbr.rel (%p100) target = $region20
    $region19: #{attention_forward.1} parent=5 // pred_region
      // Predicated region
      $region21: #{attention_forward.1} parent=19 // pred_check
        %p103 = pneg %p49
      $region22: #{attention_forward.1} parent=19 // pred_check_branch
        %105 = sbr.rel (%p103) target = $region24
      $region23: #{attention_forward.1} parent=19 // pred_region
        %p106 = scmp.lt.s32.totalorder %s8, 1
        %s107 = scalar_select %p106, %s8, 1
        %s108 = smul.addr %s107, 2
        %s109 = smul.addr %s108, 4
        %s110 = scalar_lea.vmem %s1, %s109
      $region24: #{attention_forward.1} parent=19 // pred_fallthru
        _
    $region20: #{attention_forward.1} parent=5 // pred_fallthru
      _
    %p111 = scmp.le.s32.totalorder 1, %s8
    %p112 = scmp.lt.s32.totalorder %s8, 3
    %p113 = pnand %p111, %p112
    %p114 = pneg %p113
    // Predicated region
    $region25: #{attention_forward.1} parent=5 // pred_check
      _
    $region26: #{attention_forward.1} parent=5 // pred_check_branch
      %116 = sbr.rel (%p113) target = $region28
    $region27: #{attention_forward.1} parent=5 // pred_region
      %s117 = ssub.s32 %s8, 1
      %p118 = pneg %p29
      %p119 = pneg %p26
      %p120 = scmp.lt.s32.totalorder %s13, 1
      %s121 = scalar_select %p120, %s13, 1
      %s122 = smul.addr %s121, 2
      %s123 = smul.addr %s122, 4
      %s124 = scalar_lea.vmem %s1, %s123
      %p125 = pneg %p55
      %p126 = pneg %p52
      %p127 = pneg %p81
      %p128 = pneg %p78
      %p129 = scmp.lt.s32.totalorder %s13, 1
      %s130 = scalar_select %p129, %s13, 1
      %s131 = smul.addr %s130, 2
      %s132 = smul.addr %s131, 4
      %s133 = scalar_lea.vmem %s2, %s132
      %p134 = scmp.lt.s32.totalorder %s13, 1
      %s135 = scalar_select %p134, %s13, 1
      %s136 = smul.addr %s135, 2
      %s137 = smul.addr %s136, 4
      %s138 = scalar_lea.vmem %s1, %s137
      %p139 = scmp.lt.s32.totalorder %s13, 1
      %s140 = scalar_select %p139, %s13, 1
      %s141 = smul.addr %s140, 2
      %s142 = smul.addr %s141, 4
      %s143 = scalar_lea.vmem %s2, %s142
      %v145 = vld [vmem:[%s138] sm:$0xff]
      %v146 = vld [vmem:[%s0] sm:$0xff]
      %v147 = vld [vmem:[%s0 + $0x8] sm:$0xf]
      %149 = vst [vmem:[#allocation1] ss:$2 sm:$0xff] %v145
      %v150 = vld.sshfl [vmem:[#allocation1] sm:$0xff pattern:$0x75316420]
      %v151 = vld.sshfl [vmem:[#allocation1 + $0x8] sm:$0xff pattern:$0x75316420]
      %vm152 = vcmask 31744
      %v154 = vsel %vm152, %v146, 0
      %v157 = vsel %vm152, %v147, 0
      %vm159 = vcmask 1043456
      %v160 = vsel %vm159, %v150, 0
      %v162 = vsel %vm159, %v151, 0
      %164 = vmatpush.msra.mxu0 0.0
      %165 = vmatpush.msra.mxu0 0.0
      %166 = vmatpush.msra.mxu0 0.0
      %167 = vmatpush.msra.mxu0 0.0
      %168 = vmatpush.msra.mxu0 0.0
      %169 = vmatpush.msra.mxu0 0.0
      %170 = vmatpush.msra.mxu0 0.0
      %171 = vmatpush.msra.mxu0 0.0
      %172 = vmatpush.msra.mxu0 0.0
      %173 = vmatpush.msra.mxu0 0.0
      %174 = vmatpush.msra.mxu0 0.0
      %175 = vmatpush.msra.mxu0 0.0
      %176 = vmatpush.msra.mxu0 0.0
      %177 = vmatpush.msra.mxu0 0.0
      %178 = vmatpush.msra.mxu0 0.0
      %179 = vmatpush.msra.mxu0 %v160
      %180 = vmatmul.f32.gmra.mxu0 %v154
      %v181 = vpop.f32.mrf.mxu0
      %v182 = vadd.f32 0.0, %v181
      %183 = vmatmul.f32.gmra.mxu0 %v157
      %v184 = vpop.f32.mrf.mxu0
      %v185 = vadd.f32 0.0, %v184
      %186 = vdwg.mxu0
      %187 = vmatpush.msra.mxu0 0.0
      %188 = vmatpush.msra.mxu0 0.0
      %189 = vmatpush.msra.mxu0 0.0
      %190 = vmatpush.msra.mxu0 0.0
      %191 = vmatpush.msra.mxu0 0.0
      %192 = vmatpush.msra.mxu0 0.0
      %193 = vmatpush.msra.mxu0 0.0
      %194 = vmatpush.msra.mxu0 0.0
      %195 = vmatpush.msra.mxu0 0.0
      %196 = vmatpush.msra.mxu0 0.0
      %197 = vmatpush.msra.mxu0 0.0
      %198 = vmatpush.msra.mxu0 0.0
      %199 = vmatpush.msra.mxu0 0.0
      %200 = vmatpush.msra.mxu0 0.0
      %201 = vmatpush.msra.mxu0 0.0
      %202 = vmatpush.msra.mxu0 %v162
      %203 = vmatmul.f32.gmra.mxu0 %v154
      %v204 = vpop.f32.mrf.mxu0
      %v205 = vadd.f32 0.0, %v204
      %206 = vmatmul.f32.gmra.mxu0 %v157
      %v207 = vpop.f32.mrf.mxu0
      %v208 = vadd.f32 0.0, %v207
      %209 = vdwg.mxu0
      %v212 = vrot.slane %v182, 1
      %v213 = vrot.slane %v182, 2
      %v214 = vrot.slane %v182, 3
      %v215 = vrot.slane %v182, 4
      %v216 = vrot.slane %v182, 5
      %v217 = vrot.slane %v182, 6
      %v218 = vrot.slane %v182, 7
      %v219 = vrot.slane %v185, 1
      %v220 = vrot.slane %v185, 2
      %v221 = vrot.slane %v185, 3
      %vm232 = vcmask 122880
      %233 = vst.msk [vmem:[#allocation2] sm:$0x1] %vm232, %v182
      %234 = vst.msk [vmem:[#allocation2 + $0x10] sm:$0x1] %vm232, %v212
      %235 = vst.msk [vmem:[#allocation2 + $0x20] sm:$0x1] %vm232, %v213
      %236 = vst.msk [vmem:[#allocation2 + $0x30] sm:$0x1] %vm232, %v214
      %237 = vst.msk [vmem:[#allocation2 + $0x40] sm:$0x1] %vm232, %v215
      %238 = vst.msk [vmem:[#allocation2 + $0x50] sm:$0x1] %vm232, %v216
      %239 = vst.msk [vmem:[#allocation2 + $0x60] sm:$0x1] %vm232, %v217
      %240 = vst.msk [vmem:[#allocation2 + $0x70] sm:$0x1] %vm232, %v218
      %241 = vst.msk [vmem:[#allocation2 + $0x80] sm:$0x1] %vm232, %v185
      %242 = vst.msk [vmem:[#allocation2 + $0x90] sm:$0x1] %vm232, %v219
      %243 = vst.msk [vmem:[#allocation2 + $0xa0] sm:$0x1] %vm232, %v220
      %244 = vst.msk [vmem:[#allocation2 + $0xb0] sm:$0x1] %vm232, %v221
      %v245 = vperm.slane %v182, 0
      %v246 = vperm.slane %v212, 0
      %v247 = vperm.slane %v213, 0
      %v248 = vperm.slane %v214, 0
      %v249 = vperm.slane %v215, 0
      %v250 = vperm.slane %v216, 0
      %v251 = vperm.slane %v217, 0
      %v252 = vperm.slane %v218, 0
      %v253 = vperm.slane %v185, 0
      %v254 = vperm.slane %v219, 0
      %v255 = vperm.slane %v220, 0
      %v256 = vperm.slane %v221, 0
      %257 = vrot.lane.b32.xlu0 %v245, 112
      %v258 = vpop.permute.xlu0 %257
      %259 = vrot.lane.b32.xlu0 %v246, 112
      %v260 = vpop.permute.xlu0 %259
      %261 = vrot.lane.b32.xlu0 %v247, 112
      %v262 = vpop.permute.xlu0 %261
      %263 = vrot.lane.b32.xlu0 %v248, 112
      %v264 = vpop.permute.xlu0 %263
      %265 = vrot.lane.b32.xlu0 %v249, 112
      %v266 = vpop.permute.xlu0 %265
      %267 = vrot.lane.b32.xlu0 %v250, 112
      %v268 = vpop.permute.xlu0 %267
      %269 = vrot.lane.b32.xlu0 %v251, 112
      %v270 = vpop.permute.xlu0 %269
      %271 = vrot.lane.b32.xlu0 %v252, 112
      %v272 = vpop.permute.xlu0 %271
      %273 = vrot.lane.b32.xlu0 %v253, 112
      %v274 = vpop.permute.xlu0 %273
      %275 = vrot.lane.b32.xlu0 %v254, 112
      %v276 = vpop.permute.xlu0 %275
      %277 = vrot.lane.b32.xlu0 %v255, 112
      %v278 = vpop.permute.xlu0 %277
      %279 = vrot.lane.b32.xlu0 %v256, 112
      %v280 = vpop.permute.xlu0 %279
      %293 = vst.msk [vmem:[#allocation2 + $0x1] sm:$0x1] %vm232, %v258
      %294 = vst.msk [vmem:[#allocation2 + $0x11] sm:$0x1] %vm232, %v260
      %295 = vst.msk [vmem:[#allocation2 + $0x21] sm:$0x1] %vm232, %v262
      %296 = vst.msk [vmem:[#allocation2 + $0x31] sm:$0x1] %vm232, %v264
      %297 = vst.msk [vmem:[#allocation2 + $0x41] sm:$0x1] %vm232, %v266
      %298 = vst.msk [vmem:[#allocation2 + $0x51] sm:$0x1] %vm232, %v268
      %299 = vst.msk [vmem:[#allocation2 + $0x61] sm:$0x1] %vm232, %v270
      %300 = vst.msk [vmem:[#allocation2 + $0x71] sm:$0x1] %vm232, %v272
      %301 = vst.msk [vmem:[#allocation2 + $0x81] sm:$0x1] %vm232, %v274
      %302 = vst.msk [vmem:[#allocation2 + $0x91] sm:$0x1] %vm232, %v276
      %303 = vst.msk [vmem:[#allocation2 + $0xa1] sm:$0x1] %vm232, %v278
      %304 = vst.msk [vmem:[#allocation2 + $0xb1] sm:$0x1] %vm232, %v280
      %305 = vrot.lane.b32.xlu0 %v245, 96
      %v306 = vpop.permute.xlu0 %305
      %307 = vrot.lane.b32.xlu0 %v246, 96
      %v308 = vpop.permute.xlu0 %307
      %309 = vrot.lane.b32.xlu0 %v247, 96
      %v310 = vpop.permute.xlu0 %309
      %311 = vrot.lane.b32.xlu0 %v248, 96
      %v312 = vpop.permute.xlu0 %311
      %313 = vrot.lane.b32.xlu0 %v249, 96
      %v314 = vpop.permute.xlu0 %313
      %315 = vrot.lane.b32.xlu0 %v250, 96
      %v316 = vpop.permute.xlu0 %315
      %317 = vrot.lane.b32.xlu0 %v251, 96
      %v318 = vpop.permute.xlu0 %317
      %319 = vrot.lane.b32.xlu0 %v252, 96
      %v320 = vpop.permute.xlu0 %319
      %321 = vrot.lane.b32.xlu0 %v253, 96
      %v322 = vpop.permute.xlu0 %321
      %323 = vrot.lane.b32.xlu0 %v254, 96
      %v324 = vpop.permute.xlu0 %323
      %325 = vrot.lane.b32.xlu0 %v255, 96
      %v326 = vpop.permute.xlu0 %325
      %327 = vrot.lane.b32.xlu0 %v256, 96
      %v328 = vpop.permute.xlu0 %327
      %341 = vst.msk [vmem:[#allocation2 + $0x2] sm:$0x1] %vm232, %v306
      %342 = vst.msk [vmem:[#allocation2 + $0x12] sm:$0x1] %vm232, %v308
      %343 = vst.msk [vmem:[#allocation2 + $0x22] sm:$0x1] %vm232, %v310
      %344 = vst.msk [vmem:[#allocation2 + $0x32] sm:$0x1] %vm232, %v312
      %345 = vst.msk [vmem:[#allocation2 + $0x42] sm:$0x1] %vm232, %v314
      %346 = vst.msk [vmem:[#allocation2 + $0x52] sm:$0x1] %vm232, %v316
      %347 = vst.msk [vmem:[#allocation2 + $0x62] sm:$0x1] %vm232, %v318
      %348 = vst.msk [vmem:[#allocation2 + $0x72] sm:$0x1] %vm232, %v320
      %349 = vst.msk [vmem:[#allocation2 + $0x82] sm:$0x1] %vm232, %v322
      %350 = vst.msk [vmem:[#allocation2 + $0x92] sm:$0x1] %vm232, %v324
      %351 = vst.msk [vmem:[#allocation2 + $0xa2] sm:$0x1] %vm232, %v326
      %352 = vst.msk [vmem:[#allocation2 + $0xb2] sm:$0x1] %vm232, %v328
      %353 = vrot.lane.b32.xlu0 %v245, 80
      %v354 = vpop.permute.xlu0 %353
      %355 = vrot.lane.b32.xlu0 %v246, 80
      %v356 = vpop.permute.xlu0 %355
      %357 = vrot.lane.b32.xlu0 %v247, 80
      %v358 = vpop.permute.xlu0 %357
      %359 = vrot.lane.b32.xlu0 %v248, 80
      %v360 = vpop.permute.xlu0 %359
      %361 = vrot.lane.b32.xlu0 %v249, 80
      %v362 = vpop.permute.xlu0 %361
      %363 = vrot.lane.b32.xlu0 %v250, 80
      %v364 = vpop.permute.xlu0 %363
      %365 = vrot.lane.b32.xlu0 %v251, 80
      %v366 = vpop.permute.xlu0 %365
      %367 = vrot.lane.b32.xlu0 %v252, 80
      %v368 = vpop.permute.xlu0 %367
      %369 = vrot.lane.b32.xlu0 %v253, 80
      %v370 = vpop.permute.xlu0 %369
      %371 = vrot.lane.b32.xlu0 %v254, 80
      %v372 = vpop.permute.xlu0 %371
      %373 = vrot.lane.b32.xlu0 %v255, 80
      %v374 = vpop.permute.xlu0 %373
      %375 = vrot.lane.b32.xlu0 %v256, 80
      %v376 = vpop.permute.xlu0 %375
      %389 = vst.msk [vmem:[#allocation2 + $0x3] sm:$0x1] %vm232, %v354
      %390 = vst.msk [vmem:[#allocation2 + $0x13] sm:$0x1] %vm232, %v356
      %391 = vst.msk [vmem:[#allocation2 + $0x23] sm:$0x1] %vm232, %v358
      %392 = vst.msk [vmem:[#allocation2 + $0x33] sm:$0x1] %vm232, %v360
      %393 = vst.msk [vmem:[#allocation2 + $0x43] sm:$0x1] %vm232, %v362
      %394 = vst.msk [vmem:[#allocation2 + $0x53] sm:$0x1] %vm232, %v364
      %395 = vst.msk [vmem:[#allocation2 + $0x63] sm:$0x1] %vm232, %v366
      %396 = vst.msk [vmem:[#allocation2 + $0x73] sm:$0x1] %vm232, %v368
      %397 = vst.msk [vmem:[#allocation2 + $0x83] sm:$0x1] %vm232, %v370
      %398 = vst.msk [vmem:[#allocation2 + $0x93] sm:$0x1] %vm232, %v372
      %399 = vst.msk [vmem:[#allocation2 + $0xa3] sm:$0x1] %vm232, %v374
      %400 = vst.msk [vmem:[#allocation2 + $0xb3] sm:$0x1] %vm232, %v376
      %401 = vrot.lane.b32.xlu0 %v245, 64
      %v402 = vpop.permute.xlu0 %401
      %403 = vrot.lane.b32.xlu0 %v246, 64
      %v404 = vpop.permute.xlu0 %403
      %405 = vrot.lane.b32.xlu0 %v247, 64
      %v406 = vpop.permute.xlu0 %405
      %407 = vrot.lane.b32.xlu0 %v248, 64
      %v408 = vpop.permute.xlu0 %407
      %409 = vrot.lane.b32.xlu0 %v249, 64
      %v410 = vpop.permute.xlu0 %409
      %411 = vrot.lane.b32.xlu0 %v250, 64
      %v412 = vpop.permute.xlu0 %411
      %413 = vrot.lane.b32.xlu0 %v251, 64
      %v414 = vpop.permute.xlu0 %413
      %415 = vrot.lane.b32.xlu0 %v252, 64
      %v416 = vpop.permute.xlu0 %415
      %417 = vrot.lane.b32.xlu0 %v253, 64
      %v418 = vpop.permute.xlu0 %417
      %419 = vrot.lane.b32.xlu0 %v254, 64
      %v420 = vpop.permute.xlu0 %419
      %421 = vrot.lane.b32.xlu0 %v255, 64
      %v422 = vpop.permute.xlu0 %421
      %423 = vrot.lane.b32.xlu0 %v256, 64
      %v424 = vpop.permute.xlu0 %423
      %437 = vst.msk [vmem:[#allocation2 + $0x4] sm:$0x1] %vm232, %v402
      %438 = vst.msk [vmem:[#allocation2 + $0x14] sm:$0x1] %vm232, %v404
      %439 = vst.msk [vmem:[#allocation2 + $0x24] sm:$0x1] %vm232, %v406
      %440 = vst.msk [vmem:[#allocation2 + $0x34] sm:$0x1] %vm232, %v408
      %441 = vst.msk [vmem:[#allocation2 + $0x44] sm:$0x1] %vm232, %v410
      %442 = vst.msk [vmem:[#allocation2 + $0x54] sm:$0x1] %vm232, %v412
      %443 = vst.msk [vmem:[#allocation2 + $0x64] sm:$0x1] %vm232, %v414
      %444 = vst.msk [vmem:[#allocation2 + $0x74] sm:$0x1] %vm232, %v416
      %445 = vst.msk [vmem:[#allocation2 + $0x84] sm:$0x1] %vm232, %v418
      %446 = vst.msk [vmem:[#allocation2 + $0x94] sm:$0x1] %vm232, %v420
      %447 = vst.msk [vmem:[#allocation2 + $0xa4] sm:$0x1] %vm232, %v422
      %448 = vst.msk [vmem:[#allocation2 + $0xb4] sm:$0x1] %vm232, %v424
      %449 = vrot.lane.b32.xlu0 %v245, 48
      %v450 = vpop.permute.xlu0 %449
      %451 = vrot.lane.b32.xlu0 %v246, 48
      %v452 = vpop.permute.xlu0 %451
      %453 = vrot.lane.b32.xlu0 %v247, 48
      %v454 = vpop.permute.xlu0 %453
      %455 = vrot.lane.b32.xlu0 %v248, 48
      %v456 = vpop.permute.xlu0 %455
      %457 = vrot.lane.b32.xlu0 %v249, 48
      %v458 = vpop.permute.xlu0 %457
      %459 = vrot.lane.b32.xlu0 %v250, 48
      %v460 = vpop.permute.xlu0 %459
      %461 = vrot.lane.b32.xlu0 %v251, 48
      %v462 = vpop.permute.xlu0 %461
      %463 = vrot.lane.b32.xlu0 %v252, 48
      %v464 = vpop.permute.xlu0 %463
      %465 = vrot.lane.b32.xlu0 %v253, 48
      %v466 = vpop.permute.xlu0 %465
      %467 = vrot.lane.b32.xlu0 %v254, 48
      %v468 = vpop.permute.xlu0 %467
      %469 = vrot.lane.b32.xlu0 %v255, 48
      %v470 = vpop.permute.xlu0 %469
      %471 = vrot.lane.b32.xlu0 %v256, 48
      %v472 = vpop.permute.xlu0 %471
      %485 = vst.msk [vmem:[#allocation2 + $0x5] sm:$0x1] %vm232, %v450
      %486 = vst.msk [vmem:[#allocation2 + $0x15] sm:$0x1] %vm232, %v452
      %487 = vst.msk [vmem:[#allocation2 + $0x25] sm:$0x1] %vm232, %v454
      %488 = vst.msk [vmem:[#allocation2 + $0x35] sm:$0x1] %vm232, %v456
      %489 = vst.msk [vmem:[#allocation2 + $0x45] sm:$0x1] %vm232, %v458
      %490 = vst.msk [vmem:[#allocation2 + $0x55] sm:$0x1] %vm232, %v460
      %491 = vst.msk [vmem:[#allocation2 + $0x65] sm:$0x1] %vm232, %v462
      %492 = vst.msk [vmem:[#allocation2 + $0x75] sm:$0x1] %vm232, %v464
      %493 = vst.msk [vmem:[#allocation2 + $0x85] sm:$0x1] %vm232, %v466
      %494 = vst.msk [vmem:[#allocation2 + $0x95] sm:$0x1] %vm232, %v468
      %495 = vst.msk [vmem:[#allocation2 + $0xa5] sm:$0x1] %vm232, %v470
      %496 = vst.msk [vmem:[#allocation2 + $0xb5] sm:$0x1] %vm232, %v472
      %497 = vrot.lane.b32.xlu0 %v245, 32
      %v498 = vpop.permute.xlu0 %497
      %499 = vrot.lane.b32.xlu0 %v246, 32
      %v500 = vpop.permute.xlu0 %499
      %501 = vrot.lane.b32.xlu0 %v247, 32
      %v502 = vpop.permute.xlu0 %501
      %503 = vrot.lane.b32.xlu0 %v248, 32
      %v504 = vpop.permute.xlu0 %503
      %505 = vrot.lane.b32.xlu0 %v249, 32
      %v506 = vpop.permute.xlu0 %505
      %507 = vrot.lane.b32.xlu0 %v250, 32
      %v508 = vpop.permute.xlu0 %507
      %509 = vrot.lane.b32.xlu0 %v251, 32
      %v510 = vpop.permute.xlu0 %509
      %511 = vrot.lane.b32.xlu0 %v252, 32
      %v512 = vpop.permute.xlu0 %511
      %513 = vrot.lane.b32.xlu0 %v253, 32
      %v514 = vpop.permute.xlu0 %513
      %515 = vrot.lane.b32.xlu0 %v254, 32
      %v516 = vpop.permute.xlu0 %515
      %517 = vrot.lane.b32.xlu0 %v255, 32
      %v518 = vpop.permute.xlu0 %517
      %519 = vrot.lane.b32.xlu0 %v256, 32
      %v520 = vpop.permute.xlu0 %519
      %533 = vst.msk [vmem:[#allocation2 + $0x6] sm:$0x1] %vm232, %v498
      %534 = vst.msk [vmem:[#allocation2 + $0x16] sm:$0x1] %vm232, %v500
      %535 = vst.msk [vmem:[#allocation2 + $0x26] sm:$0x1] %vm232, %v502
      %536 = vst.msk [vmem:[#allocation2 + $0x36] sm:$0x1] %vm232, %v504
      %537 = vst.msk [vmem:[#allocation2 + $0x46] sm:$0x1] %vm232, %v506
      %538 = vst.msk [vmem:[#allocation2 + $0x56] sm:$0x1] %vm232, %v508
      %539 = vst.msk [vmem:[#allocation2 + $0x66] sm:$0x1] %vm232, %v510
      %540 = vst.msk [vmem:[#allocation2 + $0x76] sm:$0x1] %vm232, %v512
      %541 = vst.msk [vmem:[#allocation2 + $0x86] sm:$0x1] %vm232, %v514
      %542 = vst.msk [vmem:[#allocation2 + $0x96] sm:$0x1] %vm232, %v516
      %543 = vst.msk [vmem:[#allocation2 + $0xa6] sm:$0x1] %vm232, %v518
      %544 = vst.msk [vmem:[#allocation2 + $0xb6] sm:$0x1] %vm232, %v520
      %545 = vrot.lane.b32.xlu0 %v245, 16
      %v546 = vpop.permute.xlu0 %545
      %547 = vrot.lane.b32.xlu0 %v246, 16
      %v548 = vpop.permute.xlu0 %547
      %549 = vrot.lane.b32.xlu0 %v247, 16
      %v550 = vpop.permute.xlu0 %549
      %551 = vrot.lane.b32.xlu0 %v248, 16
      %v552 = vpop.permute.xlu0 %551
      %553 = vrot.lane.b32.xlu0 %v249, 16
      %v554 = vpop.permute.xlu0 %553
      %555 = vrot.lane.b32.xlu0 %v250, 16
      %v556 = vpop.permute.xlu0 %555
      %557 = vrot.lane.b32.xlu0 %v251, 16
      %v558 = vpop.permute.xlu0 %557
      %559 = vrot.lane.b32.xlu0 %v252, 16
      %v560 = vpop.permute.xlu0 %559
      %561 = vrot.lane.b32.xlu0 %v253, 16
      %v562 = vpop.permute.xlu0 %561
      %563 = vrot.lane.b32.xlu0 %v254, 16
      %v564 = vpop.permute.xlu0 %563
      %565 = vrot.lane.b32.xlu0 %v255, 16
      %v566 = vpop.permute.xlu0 %565
      %567 = vrot.lane.b32.xlu0 %v256, 16
      %v568 = vpop.permute.xlu0 %567
      %581 = vst.msk [vmem:[#allocation2 + $0x7] sm:$0x1] %vm232, %v546
      %582 = vst.msk [vmem:[#allocation2 + $0x17] sm:$0x1] %vm232, %v548
      %583 = vst.msk [vmem:[#allocation2 + $0x27] sm:$0x1] %vm232, %v550
      %584 = vst.msk [vmem:[#allocation2 + $0x37] sm:$0x1] %vm232, %v552
      %585 = vst.msk [vmem:[#allocation2 + $0x47] sm:$0x1] %vm232, %v554
      %586 = vst.msk [vmem:[#allocation2 + $0x57] sm:$0x1] %vm232, %v556
      %587 = vst.msk [vmem:[#allocation2 + $0x67] sm:$0x1] %vm232, %v558
      %588 = vst.msk [vmem:[#allocation2 + $0x77] sm:$0x1] %vm232, %v560
      %589 = vst.msk [vmem:[#allocation2 + $0x87] sm:$0x1] %vm232, %v562
      %590 = vst.msk [vmem:[#allocation2 + $0x97] sm:$0x1] %vm232, %v564
      %591 = vst.msk [vmem:[#allocation2 + $0xa7] sm:$0x1] %vm232, %v566
      %592 = vst.msk [vmem:[#allocation2 + $0xb7] sm:$0x1] %vm232, %v568
      %v595 = vrot.slane %v205, 1
      %v596 = vrot.slane %v205, 2
      %v597 = vrot.slane %v205, 3
      %v598 = vrot.slane %v205, 4
      %v599 = vrot.slane %v205, 5
      %v600 = vrot.slane %v205, 6
      %v601 = vrot.slane %v205, 7
      %v602 = vrot.slane %v208, 1
      %v603 = vrot.slane %v208, 2
      %v604 = vrot.slane %v208, 3
      %615 = vst.msk [vmem:[#allocation2 + $0x8] sm:$0x1] %vm232, %v205
      %616 = vst.msk [vmem:[#allocation2 + $0x18] sm:$0x1] %vm232, %v595
      %617 = vst.msk [vmem:[#allocation2 + $0x28] sm:$0x1] %vm232, %v596
      %618 = vst.msk [vmem:[#allocation2 + $0x38] sm:$0x1] %vm232, %v597
      %619 = vst.msk [vmem:[#allocation2 + $0x48] sm:$0x1] %vm232, %v598
      %620 = vst.msk [vmem:[#allocation2 + $0x58] sm:$0x1] %vm232, %v599
      %621 = vst.msk [vmem:[#allocation2 + $0x68] sm:$0x1] %vm232, %v600
      %622 = vst.msk [vmem:[#allocation2 + $0x78] sm:$0x1] %vm232, %v601
      %623 = vst.msk [vmem:[#allocation2 + $0x88] sm:$0x1] %vm232, %v208
      %624 = vst.msk [vmem:[#allocation2 + $0x98] sm:$0x1] %vm232, %v602
      %625 = vst.msk [vmem:[#allocation2 + $0xa8] sm:$0x1] %vm232, %v603
      %626 = vst.msk [vmem:[#allocation2 + $0xb8] sm:$0x1] %vm232, %v604
      %v627 = vperm.slane %v205, 0
      %v628 = vperm.slane %v595, 0
      %v629 = vperm.slane %v596, 0
      %v630 = vperm.slane %v597, 0
      %v631 = vperm.slane %v598, 0
      %v632 = vperm.slane %v599, 0
      %v633 = vperm.slane %v600, 0
      %v634 = vperm.slane %v601, 0
      %v635 = vperm.slane %v208, 0
      %v636 = vperm.slane %v602, 0
      %v637 = vperm.slane %v603, 0
      %v638 = vperm.slane %v604, 0
      %639 = vrot.lane.b32.xlu0 %v627, 112
      %v640 = vpop.permute.xlu0 %639
      %641 = vrot.lane.b32.xlu0 %v628, 112
      %v642 = vpop.permute.xlu0 %641
      %643 = vrot.lane.b32.xlu0 %v629, 112
      %v644 = vpop.permute.xlu0 %643
      %645 = vrot.lane.b32.xlu0 %v630, 112
      %v646 = vpop.permute.xlu0 %645
      %647 = vrot.lane.b32.xlu0 %v631, 112
      %v648 = vpop.permute.xlu0 %647
      %649 = vrot.lane.b32.xlu0 %v632, 112
      %v650 = vpop.permute.xlu0 %649
      %651 = vrot.lane.b32.xlu0 %v633, 112
      %v652 = vpop.permute.xlu0 %651
      %653 = vrot.lane.b32.xlu0 %v634, 112
      %v654 = vpop.permute.xlu0 %653
      %655 = vrot.lane.b32.xlu0 %v635, 112
      %v656 = vpop.permute.xlu0 %655
      %657 = vrot.lane.b32.xlu0 %v636, 112
      %v658 = vpop.permute.xlu0 %657
      %659 = vrot.lane.b32.xlu0 %v637, 112
      %v660 = vpop.permute.xlu0 %659
      %661 = vrot.lane.b32.xlu0 %v638, 112
      %v662 = vpop.permute.xlu0 %661
      %675 = vst.msk [vmem:[#allocation2 + $0x9] sm:$0x1] %vm232, %v640
      %676 = vst.msk [vmem:[#allocation2 + $0x19] sm:$0x1] %vm232, %v642
      %677 = vst.msk [vmem:[#allocation2 + $0x29] sm:$0x1] %vm232, %v644
      %678 = vst.msk [vmem:[#allocation2 + $0x39] sm:$0x1] %vm232, %v646
      %679 = vst.msk [vmem:[#allocation2 + $0x49] sm:$0x1] %vm232, %v648
      %680 = vst.msk [vmem:[#allocation2 + $0x59] sm:$0x1] %vm232, %v650
      %681 = vst.msk [vmem:[#allocation2 + $0x69] sm:$0x1] %vm232, %v652
      %682 = vst.msk [vmem:[#allocation2 + $0x79] sm:$0x1] %vm232, %v654
      %683 = vst.msk [vmem:[#allocation2 + $0x89] sm:$0x1] %vm232, %v656
      %684 = vst.msk [vmem:[#allocation2 + $0x99] sm:$0x1] %vm232, %v658
      %685 = vst.msk [vmem:[#allocation2 + $0xa9] sm:$0x1] %vm232, %v660
      %686 = vst.msk [vmem:[#allocation2 + $0xb9] sm:$0x1] %vm232, %v662
      %687 = vrot.lane.b32.xlu0 %v627, 96
      %v688 = vpop.permute.xlu0 %687
      %689 = vrot.lane.b32.xlu0 %v628, 96
      %v690 = vpop.permute.xlu0 %689
      %691 = vrot.lane.b32.xlu0 %v629, 96
      %v692 = vpop.permute.xlu0 %691
      %693 = vrot.lane.b32.xlu0 %v630, 96
      %v694 = vpop.permute.xlu0 %693
      %695 = vrot.lane.b32.xlu0 %v631, 96
      %v696 = vpop.permute.xlu0 %695
      %697 = vrot.lane.b32.xlu0 %v632, 96
      %v698 = vpop.permute.xlu0 %697
      %699 = vrot.lane.b32.xlu0 %v633, 96
      %v700 = vpop.permute.xlu0 %699
      %701 = vrot.lane.b32.xlu0 %v634, 96
      %v702 = vpop.permute.xlu0 %701
      %703 = vrot.lane.b32.xlu0 %v635, 96
      %v704 = vpop.permute.xlu0 %703
      %705 = vrot.lane.b32.xlu0 %v636, 96
      %v706 = vpop.permute.xlu0 %705
      %707 = vrot.lane.b32.xlu0 %v637, 96
      %v708 = vpop.permute.xlu0 %707
      %709 = vrot.lane.b32.xlu0 %v638, 96
      %v710 = vpop.permute.xlu0 %709
      %723 = vst.msk [vmem:[#allocation2 + $0xa] sm:$0x1] %vm232, %v688
      %724 = vst.msk [vmem:[#allocation2 + $0x1a] sm:$0x1] %vm232, %v690
      %725 = vst.msk [vmem:[#allocation2 + $0x2a] sm:$0x1] %vm232, %v692
      %726 = vst.msk [vmem:[#allocation2 + $0x3a] sm:$0x1] %vm232, %v694
      %727 = vst.msk [vmem:[#allocation2 + $0x4a] sm:$0x1] %vm232, %v696
      %728 = vst.msk [vmem:[#allocation2 + $0x5a] sm:$0x1] %vm232, %v698
      %729 = vst.msk [vmem:[#allocation2 + $0x6a] sm:$0x1] %vm232, %v700
      %730 = vst.msk [vmem:[#allocation2 + $0x7a] sm:$0x1] %vm232, %v702
      %731 = vst.msk [vmem:[#allocation2 + $0x8a] sm:$0x1] %vm232, %v704
      %732 = vst.msk [vmem:[#allocation2 + $0x9a] sm:$0x1] %vm232, %v706
      %733 = vst.msk [vmem:[#allocation2 + $0xaa] sm:$0x1] %vm232, %v708
      %734 = vst.msk [vmem:[#allocation2 + $0xba] sm:$0x1] %vm232, %v710
      %735 = vrot.lane.b32.xlu0 %v627, 80
      %v736 = vpop.permute.xlu0 %735
      %737 = vrot.lane.b32.xlu0 %v628, 80
      %v738 = vpop.permute.xlu0 %737
      %739 = vrot.lane.b32.xlu0 %v629, 80
      %v740 = vpop.permute.xlu0 %739
      %741 = vrot.lane.b32.xlu0 %v630, 80
      %v742 = vpop.permute.xlu0 %741
      %743 = vrot.lane.b32.xlu0 %v631, 80
      %v744 = vpop.permute.xlu0 %743
      %745 = vrot.lane.b32.xlu0 %v632, 80
      %v746 = vpop.permute.xlu0 %745
      %747 = vrot.lane.b32.xlu0 %v633, 80
      %v748 = vpop.permute.xlu0 %747
      %749 = vrot.lane.b32.xlu0 %v634, 80
      %v750 = vpop.permute.xlu0 %749
      %751 = vrot.lane.b32.xlu0 %v635, 80
      %v752 = vpop.permute.xlu0 %751
      %753 = vrot.lane.b32.xlu0 %v636, 80
      %v754 = vpop.permute.xlu0 %753
      %755 = vrot.lane.b32.xlu0 %v637, 80
      %v756 = vpop.permute.xlu0 %755
      %757 = vrot.lane.b32.xlu0 %v638, 80
      %v758 = vpop.permute.xlu0 %757
      %771 = vst.msk [vmem:[#allocation2 + $0xb] sm:$0x1] %vm232, %v736
      %772 = vst.msk [vmem:[#allocation2 + $0x1b] sm:$0x1] %vm232, %v738
      %773 = vst.msk [vmem:[#allocation2 + $0x2b] sm:$0x1] %vm232, %v740
      %774 = vst.msk [vmem:[#allocation2 + $0x3b] sm:$0x1] %vm232, %v742
      %775 = vst.msk [vmem:[#allocation2 + $0x4b] sm:$0x1] %vm232, %v744
      %776 = vst.msk [vmem:[#allocation2 + $0x5b] sm:$0x1] %vm232, %v746
      %777 = vst.msk [vmem:[#allocation2 + $0x6b] sm:$0x1] %vm232, %v748
      %778 = vst.msk [vmem:[#allocation2 + $0x7b] sm:$0x1] %vm232, %v750
      %779 = vst.msk [vmem:[#allocation2 + $0x8b] sm:$0x1] %vm232, %v752
      %780 = vst.msk [vmem:[#allocation2 + $0x9b] sm:$0x1] %vm232, %v754
      %781 = vst.msk [vmem:[#allocation2 + $0xab] sm:$0x1] %vm232, %v756
      %782 = vst.msk [vmem:[#allocation2 + $0xbb] sm:$0x1] %vm232, %v758
      %783 = vrot.lane.b32.xlu0 %v627, 64
      %v784 = vpop.permute.xlu0 %783
      %785 = vrot.lane.b32.xlu0 %v628, 64
      %v786 = vpop.permute.xlu0 %785
      %787 = vrot.lane.b32.xlu0 %v629, 64
      %v788 = vpop.permute.xlu0 %787
      %789 = vrot.lane.b32.xlu0 %v630, 64
      %v790 = vpop.permute.xlu0 %789
      %791 = vrot.lane.b32.xlu0 %v631, 64
      %v792 = vpop.permute.xlu0 %791
      %793 = vrot.lane.b32.xlu0 %v632, 64
      %v794 = vpop.permute.xlu0 %793
      %795 = vrot.lane.b32.xlu0 %v633, 64
      %v796 = vpop.permute.xlu0 %795
      %797 = vrot.lane.b32.xlu0 %v634, 64
      %v798 = vpop.permute.xlu0 %797
      %799 = vrot.lane.b32.xlu0 %v635, 64
      %v800 = vpop.permute.xlu0 %799
      %801 = vrot.lane.b32.xlu0 %v636, 64
      %v802 = vpop.permute.xlu0 %801
      %803 = vrot.lane.b32.xlu0 %v637, 64
      %v804 = vpop.permute.xlu0 %803
      %805 = vrot.lane.b32.xlu0 %v638, 64
      %v806 = vpop.permute.xlu0 %805
      %819 = vst.msk [vmem:[#allocation2 + $0xc] sm:$0x1] %vm232, %v784
      %820 = vst.msk [vmem:[#allocation2 + $0x1c] sm:$0x1] %vm232, %v786
      %821 = vst.msk [vmem:[#allocation2 + $0x2c] sm:$0x1] %vm232, %v788
      %822 = vst.msk [vmem:[#allocation2 + $0x3c] sm:$0x1] %vm232, %v790
      %823 = vst.msk [vmem:[#allocation2 + $0x4c] sm:$0x1] %vm232, %v792
      %824 = vst.msk [vmem:[#allocation2 + $0x5c] sm:$0x1] %vm232, %v794
      %825 = vst.msk [vmem:[#allocation2 + $0x6c] sm:$0x1] %vm232, %v796
      %826 = vst.msk [vmem:[#allocation2 + $0x7c] sm:$0x1] %vm232, %v798
      %827 = vst.msk [vmem:[#allocation2 + $0x8c] sm:$0x1] %vm232, %v800
      %828 = vst.msk [vmem:[#allocation2 + $0x9c] sm:$0x1] %vm232, %v802
      %829 = vst.msk [vmem:[#allocation2 + $0xac] sm:$0x1] %vm232, %v804
      %830 = vst.msk [vmem:[#allocation2 + $0xbc] sm:$0x1] %vm232, %v806
      %831 = vrot.lane.b32.xlu0 %v627, 48
      %v832 = vpop.permute.xlu0 %831
      %833 = vrot.lane.b32.xlu0 %v628, 48
      %v834 = vpop.permute.xlu0 %833
      %835 = vrot.lane.b32.xlu0 %v629, 48
      %v836 = vpop.permute.xlu0 %835
      %837 = vrot.lane.b32.xlu0 %v630, 48
      %v838 = vpop.permute.xlu0 %837
      %839 = vrot.lane.b32.xlu0 %v631, 48
      %v840 = vpop.permute.xlu0 %839
      %841 = vrot.lane.b32.xlu0 %v632, 48
      %v842 = vpop.permute.xlu0 %841
      %843 = vrot.lane.b32.xlu0 %v633, 48
      %v844 = vpop.permute.xlu0 %843
      %845 = vrot.lane.b32.xlu0 %v634, 48
      %v846 = vpop.permute.xlu0 %845
      %847 = vrot.lane.b32.xlu0 %v635, 48
      %v848 = vpop.permute.xlu0 %847
      %849 = vrot.lane.b32.xlu0 %v636, 48
      %v850 = vpop.permute.xlu0 %849
      %851 = vrot.lane.b32.xlu0 %v637, 48
      %v852 = vpop.permute.xlu0 %851
      %853 = vrot.lane.b32.xlu0 %v638, 48
      %v854 = vpop.permute.xlu0 %853
      %867 = vst.msk [vmem:[#allocation2 + $0xd] sm:$0x1] %vm232, %v832
      %868 = vst.msk [vmem:[#allocation2 + $0x1d] sm:$0x1] %vm232, %v834
      %869 = vst.msk [vmem:[#allocation2 + $0x2d] sm:$0x1] %vm232, %v836
      %870 = vst.msk [vmem:[#allocation2 + $0x3d] sm:$0x1] %vm232, %v838
      %871 = vst.msk [vmem:[#allocation2 + $0x4d] sm:$0x1] %vm232, %v840
      %872 = vst.msk [vmem:[#allocation2 + $0x5d] sm:$0x1] %vm232, %v842
      %873 = vst.msk [vmem:[#allocation2 + $0x6d] sm:$0x1] %vm232, %v844
      %874 = vst.msk [vmem:[#allocation2 + $0x7d] sm:$0x1] %vm232, %v846
      %875 = vst.msk [vmem:[#allocation2 + $0x8d] sm:$0x1] %vm232, %v848
      %876 = vst.msk [vmem:[#allocation2 + $0x9d] sm:$0x1] %vm232, %v850
      %877 = vst.msk [vmem:[#allocation2 + $0xad] sm:$0x1] %vm232, %v852
      %878 = vst.msk [vmem:[#allocation2 + $0xbd] sm:$0x1] %vm232, %v854
      %879 = vrot.lane.b32.xlu0 %v627, 32
      %v880 = vpop.permute.xlu0 %879
      %881 = vrot.lane.b32.xlu0 %v628, 32
      %v882 = vpop.permute.xlu0 %881
      %883 = vrot.lane.b32.xlu0 %v629, 32
      %v884 = vpop.permute.xlu0 %883
      %885 = vrot.lane.b32.xlu0 %v630, 32
      %v886 = vpop.permute.xlu0 %885
      %887 = vrot.lane.b32.xlu0 %v631, 32
      %v888 = vpop.permute.xlu0 %887
      %889 = vrot.lane.b32.xlu0 %v632, 32
      %v890 = vpop.permute.xlu0 %889
      %891 = vrot.lane.b32.xlu0 %v633, 32
      %v892 = vpop.permute.xlu0 %891
      %893 = vrot.lane.b32.xlu0 %v634, 32
      %v894 = vpop.permute.xlu0 %893
      %895 = vrot.lane.b32.xlu0 %v635, 32
      %v896 = vpop.permute.xlu0 %895
      %897 = vrot.lane.b32.xlu0 %v636, 32
      %v898 = vpop.permute.xlu0 %897
      %899 = vrot.lane.b32.xlu0 %v637, 32
      %v900 = vpop.permute.xlu0 %899
      %901 = vrot.lane.b32.xlu0 %v638, 32
      %v902 = vpop.permute.xlu0 %901
      %915 = vst.msk [vmem:[#allocation2 + $0xe] sm:$0x1] %vm232, %v880
      %916 = vst.msk [vmem:[#allocation2 + $0x1e] sm:$0x1] %vm232, %v882
      %917 = vst.msk [vmem:[#allocation2 + $0x2e] sm:$0x1] %vm232, %v884
      %918 = vst.msk [vmem:[#allocation2 + $0x3e] sm:$0x1] %vm232, %v886
      %919 = vst.msk [vmem:[#allocation2 + $0x4e] sm:$0x1] %vm232, %v888
      %920 = vst.msk [vmem:[#allocation2 + $0x5e] sm:$0x1] %vm232, %v890
      %921 = vst.msk [vmem:[#allocation2 + $0x6e] sm:$0x1] %vm232, %v892
      %922 = vst.msk [vmem:[#allocation2 + $0x7e] sm:$0x1] %vm232, %v894
      %923 = vst.msk [vmem:[#allocation2 + $0x8e] sm:$0x1] %vm232, %v896
      %924 = vst.msk [vmem:[#allocation2 + $0x9e] sm:$0x1] %vm232, %v898
      %925 = vst.msk [vmem:[#allocation2 + $0xae] sm:$0x1] %vm232, %v900
      %926 = vst.msk [vmem:[#allocation2 + $0xbe] sm:$0x1] %vm232, %v902
      %927 = vrot.lane.b32.xlu0 %v627, 16
      %v928 = vpop.permute.xlu0 %927
      %929 = vrot.lane.b32.xlu0 %v628, 16
      %v930 = vpop.permute.xlu0 %929
      %931 = vrot.lane.b32.xlu0 %v629, 16
      %v932 = vpop.permute.xlu0 %931
      %933 = vrot.lane.b32.xlu0 %v630, 16
      %v934 = vpop.permute.xlu0 %933
      %935 = vrot.lane.b32.xlu0 %v631, 16
      %v936 = vpop.permute.xlu0 %935
      %937 = vrot.lane.b32.xlu0 %v632, 16
      %v938 = vpop.permute.xlu0 %937
      %939 = vrot.lane.b32.xlu0 %v633, 16
      %v940 = vpop.permute.xlu0 %939
      %941 = vrot.lane.b32.xlu0 %v634, 16
      %v942 = vpop.permute.xlu0 %941
      %943 = vrot.lane.b32.xlu0 %v635, 16
      %v944 = vpop.permute.xlu0 %943
      %945 = vrot.lane.b32.xlu0 %v636, 16
      %v946 = vpop.permute.xlu0 %945
      %947 = vrot.lane.b32.xlu0 %v637, 16
      %v948 = vpop.permute.xlu0 %947
      %949 = vrot.lane.b32.xlu0 %v638, 16
      %v950 = vpop.permute.xlu0 %949
      %963 = vst.msk [vmem:[#allocation2 + $0xf] sm:$0x1] %vm232, %v928
      %964 = vst.msk [vmem:[#allocation2 + $0x1f] sm:$0x1] %vm232, %v930
      %965 = vst.msk [vmem:[#allocation2 + $0x2f] sm:$0x1] %vm232, %v932
      %966 = vst.msk [vmem:[#allocation2 + $0x3f] sm:$0x1] %vm232, %v934
      %967 = vst.msk [vmem:[#allocation2 + $0x4f] sm:$0x1] %vm232, %v936
      %968 = vst.msk [vmem:[#allocation2 + $0x5f] sm:$0x1] %vm232, %v938
      %969 = vst.msk [vmem:[#allocation2 + $0x6f] sm:$0x1] %vm232, %v940
      %970 = vst.msk [vmem:[#allocation2 + $0x7f] sm:$0x1] %vm232, %v942
      %971 = vst.msk [vmem:[#allocation2 + $0x8f] sm:$0x1] %vm232, %v944
      %972 = vst.msk [vmem:[#allocation2 + $0x9f] sm:$0x1] %vm232, %v946
      %973 = vst.msk [vmem:[#allocation2 + $0xaf] sm:$0x1] %vm232, %v948
      %974 = vst.msk [vmem:[#allocation2 + $0xbf] sm:$0x1] %vm232, %v950
      %v975 = vld [vmem:[#allocation2] sm:$0xff]
      %v976 = vld [vmem:[#allocation2 + $0x8] sm:$0xff]
      %v977 = vld [vmem:[#allocation2 + $0x10] sm:$0xff]
      %v978 = vld [vmem:[#allocation2 + $0x18] sm:$0xff]
      %v979 = vld [vmem:[#allocation2 + $0x20] sm:$0xff]
      %v980 = vld [vmem:[#allocation2 + $0x28] sm:$0xff]
      %v981 = vld [vmem:[#allocation2 + $0x30] sm:$0xff]
      %v982 = vld [vmem:[#allocation2 + $0x38] sm:$0xff]
      %v983 = vpack.c.bf16 %v975, %v975
      %v984 = vpack.c.bf16 %v976, %v976
      %v985 = vpack.c.bf16 %v977, %v977
      %v986 = vpack.c.bf16 %v978, %v978
      %v987 = vpack.c.bf16 %v979, %v979
      %v988 = vpack.c.bf16 %v980, %v980
      %v989 = vpack.c.bf16 %v981, %v981
      %v990 = vpack.c.bf16 %v982, %v982
      %s991 = scalar_lea.vmem [#allocation2], 64
      %v992 = vld [vmem:[%s991] sm:$0xff]
      %v993 = vld [vmem:[%s991 + $0x8] sm:$0xff]
      %v994 = vld [vmem:[%s991 + $0x10] sm:$0xff]
      %v995 = vld [vmem:[%s991 + $0x18] sm:$0xff]
      %v996 = vld [vmem:[%s991 + $0x20] sm:$0xff]
      %v997 = vld [vmem:[%s991 + $0x28] sm:$0xff]
      %v998 = vld [vmem:[%s991 + $0x30] sm:$0xff]
      %v999 = vld [vmem:[%s991 + $0x38] sm:$0xff]
      %v1000 = vpack.c.bf16 %v992, %v992
      %v1001 = vpack.c.bf16 %v993, %v993
      %v1002 = vpack.c.bf16 %v994, %v994
      %v1003 = vpack.c.bf16 %v995, %v995
      %v1004 = vpack.c.bf16 %v996, %v996
      %v1005 = vpack.c.bf16 %v997, %v997
      %v1006 = vpack.c.bf16 %v998, %v998
      %v1007 = vpack.c.bf16 %v999, %v999
      %s1008 = scalar_lea.vmem [#allocation2], 128
      %v1009 = vld [vmem:[%s1008] sm:$0xff]
      %v1010 = vld [vmem:[%s1008 + $0x8] sm:$0xff]
      %v1011 = vld [vmem:[%s1008 + $0x10] sm:$0xff]
      %v1012 = vld [vmem:[%s1008 + $0x18] sm:$0xff]
      %v1013 = vld [vmem:[%s1008 + $0x20] sm:$0xff]
      %v1014 = vld [vmem:[%s1008 + $0x28] sm:$0xff]
      %v1015 = vld [vmem:[%s1008 + $0x30] sm:$0xff]
      %v1016 = vld [vmem:[%s1008 + $0x38] sm:$0xff]
      %v1017 = vpack.c.bf16 %v1009, %v1009
      %v1018 = vpack.c.bf16 %v1010, %v1010
      %v1019 = vpack.c.bf16 %v1011, %v1011
      %v1020 = vpack.c.bf16 %v1012, %v1012
      %v1021 = vpack.c.bf16 %v1013, %v1013
      %v1022 = vpack.c.bf16 %v1014, %v1014
      %v1023 = vpack.c.bf16 %v1015, %v1015
      %v1024 = vpack.c.bf16 %v1016, %v1016
      %v1027 = vunpack.c.l.b16 %v983
      %v1028 = vunpack.c.l.b16 %v984
      %v1029 = vpack.c.b16 %v1028, %v1027
      %v1032 = vunpack.c.l.b16 %v1000
      %v1033 = vunpack.c.l.b16 %v1001
      %v1034 = vpack.c.b16 %v1033, %v1032
      %vm1036 = vcmask 130048
      %v1038 = vsel %vm1036, %v1029, 0
      %1040 = vmatpush.bf16.msra.mxu0 0
      %1041 = vmatpush.bf16.msra.mxu0 0
      %1042 = vmatpush.bf16.msra.mxu0 0
      %1043 = vmatpush.bf16.msra.mxu0 0
      %1044 = vmatpush.bf16.msra.mxu0 0
      %1045 = vmatpush.bf16.msra.mxu0 0
      %1046 = vmatpush.bf16.msra.mxu0 0
      %1047 = vmatpush.bf16.msra.mxu0 %v1034
      %1048 = vmatmul.bf16.gmra.mxu0 %v1038
      %v1049 = vpop.f32.mrf.mxu0
      %v1050 = vadd.f32 0.0, %v1049
      %v1051 = vpop.f32.mrf.mxu0
      %v1052 = vadd.f32 0.0, %v1051
      %1053 = vdwg.mxu0
      %v1056 = vunpack.c.l.b16 %v985
      %v1057 = vunpack.c.l.b16 %v986
      %v1058 = vpack.c.b16 %v1057, %v1056
      %v1061 = vunpack.c.l.b16 %v1002
      %v1062 = vunpack.c.l.b16 %v1003
      %v1063 = vpack.c.b16 %v1062, %v1061
      %v1066 = vsel %vm1036, %v1058, 0
      %1068 = vmatpush.bf16.msra.mxu0 0
      %1069 = vmatpush.bf16.msra.mxu0 0
      %1070 = vmatpush.bf16.msra.mxu0 0
      %1071 = vmatpush.bf16.msra.mxu0 0
      %1072 = vmatpush.bf16.msra.mxu0 0
      %1073 = vmatpush.bf16.msra.mxu0 0
      %1074 = vmatpush.bf16.msra.mxu0 0
      %1075 = vmatpush.bf16.msra.mxu0 %v1063
      %1076 = vmatmul.bf16.gmra.mxu0 %v1066
      %v1077 = vpop.f32.mrf.mxu0
      %v1078 = vadd.f32 0.0, %v1077
      %v1079 = vpop.f32.mrf.mxu0
      %v1080 = vadd.f32 0.0, %v1079
      %1081 = vdwg.mxu0
      %v1084 = vunpack.c.l.b16 %v987
      %v1085 = vunpack.c.l.b16 %v988
      %v1086 = vpack.c.b16 %v1085, %v1084
      %v1089 = vunpack.c.l.b16 %v1004
      %v1090 = vunpack.c.l.b16 %v1005
      %v1091 = vpack.c.b16 %v1090, %v1089
      %v1094 = vsel %vm1036, %v1086, 0
      %1096 = vmatpush.bf16.msra.mxu0 0
      %1097 = vmatpush.bf16.msra.mxu0 0
      %1098 = vmatpush.bf16.msra.mxu0 0
      %1099 = vmatpush.bf16.msra.mxu0 0
      %1100 = vmatpush.bf16.msra.mxu0 0
      %1101 = vmatpush.bf16.msra.mxu0 0
      %1102 = vmatpush.bf16.msra.mxu0 0
      %1103 = vmatpush.bf16.msra.mxu0 %v1091
      %1104 = vmatmul.bf16.gmra.mxu0 %v1094
      %v1105 = vpop.f32.mrf.mxu0
      %v1106 = vadd.f32 0.0, %v1105
      %v1107 = vpop.f32.mrf.mxu0
      %v1108 = vadd.f32 0.0, %v1107
      %1109 = vdwg.mxu0
      %v1112 = vunpack.c.l.b16 %v989
      %v1113 = vunpack.c.l.b16 %v990
      %v1114 = vpack.c.b16 %v1113, %v1112
      %v1117 = vunpack.c.l.b16 %v1006
      %v1118 = vunpack.c.l.b16 %v1007
      %v1119 = vpack.c.b16 %v1118, %v1117
      %v1122 = vsel %vm1036, %v1114, 0
      %1124 = vmatpush.bf16.msra.mxu0 0
      %1125 = vmatpush.bf16.msra.mxu0 0
      %1126 = vmatpush.bf16.msra.mxu0 0
      %1127 = vmatpush.bf16.msra.mxu0 0
      %1128 = vmatpush.bf16.msra.mxu0 0
      %1129 = vmatpush.bf16.msra.mxu0 0
      %1130 = vmatpush.bf16.msra.mxu0 0
      %1131 = vmatpush.bf16.msra.mxu0 %v1119
      %1132 = vmatmul.bf16.gmra.mxu0 %v1122
      %v1133 = vpop.f32.mrf.mxu0
      %v1134 = vadd.f32 0.0, %v1133
      %v1135 = vpop.f32.mrf.mxu0
      %v1136 = vadd.f32 0.0, %v1135
      %1137 = vdwg.mxu0
      %v1138 = vsel %vm1036, %v1050, -inf
      %v1139 = vsel %vm1036, %v1078, -inf
      %v1140 = vsel %vm1036, %v1106, -inf
      %v1141 = vmax.f32 %v1138, %v1140
      %v1142 = vsel %vm1036, %v1134, -inf
      %v1143 = vmax.f32 %v1139, %v1142
      %v1144 = vmax.f32 %v1141, %v1143
      %v1145 = vsel %vm1036, %v1052, -inf
      %v1146 = vsel %vm1036, %v1080, -inf
      %v1147 = vsel %vm1036, %v1108, -inf
      %v1148 = vmax.f32 %v1145, %v1147
      %v1149 = vsel %vm1036, %v1136, -inf
      %v1150 = vmax.f32 %v1146, %v1149
      %v1151 = vmax.f32 %v1148, %v1150
      %v1152 = vsub.f32 %v1050, %v1144
      %v1153 = vsub.f32 %v1052, %v1151
      %v1154 = vsub.f32 %v1078, %v1144
      %v1155 = vsub.f32 %v1080, %v1151
      %v1156 = vsub.f32 %v1106, %v1144
      %v1157 = vsub.f32 %v1108, %v1151
      %v1158 = vsub.f32 %v1134, %v1144
      %v1159 = vsub.f32 %v1136, %v1151
      %v1160 = vmul.f32 %v1152, 1.442695
      %v1161 = vpow.pop %v1160
      %v1162 = vmul.f32 %v1153, 1.442695
      %v1163 = vpow.pop %v1162
      %v1164 = vmul.f32 %v1154, 1.442695
      %v1165 = vpow.pop %v1164
      %v1166 = vmul.f32 %v1155, 1.442695
      %v1167 = vpow.pop %v1166
      %v1168 = vmul.f32 %v1156, 1.442695
      %v1169 = vpow.pop %v1168
      %v1170 = vmul.f32 %v1157, 1.442695
      %v1171 = vpow.pop %v1170
      %v1172 = vmul.f32 %v1158, 1.442695
      %v1173 = vpow.pop %v1172
      %v1174 = vmul.f32 %v1159, 1.442695
      %v1175 = vpow.pop %v1174
      %v1176 = vsel %vm1036, %v1161, 0.0
      %v1177 = vsel %vm1036, %v1165, 0.0
      %v1178 = vadd.f32 %v1176, %v1177
      %v1179 = vsel %vm1036, %v1169, 0.0
      %v1180 = vadd.f32 %v1178, %v1179
      %v1181 = vsel %vm1036, %v1173, 0.0
      %v1182 = vadd.f32 %v1180, %v1181
      %v1183 = vsel %vm1036, %v1163, 0.0
      %v1184 = vsel %vm1036, %v1167, 0.0
      %v1185 = vadd.f32 %v1183, %v1184
      %v1186 = vsel %vm1036, %v1171, 0.0
      %v1187 = vadd.f32 %v1185, %v1186
      %v1188 = vsel %vm1036, %v1175, 0.0
      %v1189 = vadd.f32 %v1187, %v1188
      %v1190 = vrcp.pop %v1182
      %v1191 = vmul.f32 %v1182, %v1190
      %v1192 = vsub.f32 1.0, %v1191
      %v1193 = vmul.f32 %v1190, %v1192
      %v1194 = vadd.f32 %v1190, %v1193
      %vm1195 = vweird.f32 %v1182
      %vm1196 = vweird.f32 %v1190
      %vm1197 = vmor %vm1195, %vm1196
      %v1198 = vsel %vm1197, %v1190, %v1194
      %v1199 = vand.u32 2147483647, %v1182
      %vm1200 = vcmp.eq.f32.partialorder %v1199, 8.507059e+37
      %v1201 = vand.u32 %v1182, 2147483648
      %v1202 = vor.u32 1.1754944e-38, %v1201
      %v1203 = vsel %vm1200, %v1202, %v1198
      %v1204 = vrcp.pop %v1189
      %v1205 = vmul.f32 %v1189, %v1204
      %v1206 = vsub.f32 1.0, %v1205
      %v1207 = vmul.f32 %v1204, %v1206
      %v1208 = vadd.f32 %v1204, %v1207
      %vm1209 = vweird.f32 %v1189
      %vm1210 = vweird.f32 %v1204
      %vm1211 = vmor %vm1209, %vm1210
      %v1212 = vsel %vm1211, %v1204, %v1208
      %v1213 = vand.u32 2147483647, %v1189
      %vm1214 = vcmp.eq.f32.partialorder %v1213, 8.507059e+37
      %v1215 = vand.u32 %v1189, 2147483648
      %v1216 = vor.u32 1.1754944e-38, %v1215
      %v1217 = vsel %vm1214, %v1216, %v1212
      %v1218 = vmul.f32 %v1161, %v1203
      %v1219 = vmul.f32 %v1163, %v1217
      %v1220 = vmul.f32 %v1165, %v1203
      %v1221 = vmul.f32 %v1167, %v1217
      %v1222 = vmul.f32 %v1169, %v1203
      %v1223 = vmul.f32 %v1171, %v1217
      %v1224 = vmul.f32 %v1173, %v1203
      %v1225 = vmul.f32 %v1175, %v1217
      %v1226 = vpack.c.bf16 %v1218, %v1218
      %v1227 = vpack.c.bf16 %v1219, %v1219
      %v1228 = vpack.c.bf16 %v1220, %v1220
      %v1229 = vpack.c.bf16 %v1221, %v1221
      %v1230 = vpack.c.bf16 %v1222, %v1222
      %v1231 = vpack.c.bf16 %v1223, %v1223
      %v1232 = vpack.c.bf16 %v1224, %v1224
      %v1233 = vpack.c.bf16 %v1225, %v1225
      %v1236 = vunpack.c.l.b16 %v1017
      %v1237 = vunpack.c.l.b16 %v1018
      %v1238 = vpack.c.b16 %v1237, %v1236
      %v1241 = vunpack.c.l.b16 %v1226
      %v1242 = vunpack.c.l.b16 %v1227
      %v1243 = vpack.c.b16 %v1242, %v1241
      %v1246 = vsel %vm1036, %v1238, 0
      %1248 = vmatpush.bf16.msra.mxu0 0
      %1249 = vmatpush.bf16.msra.mxu0 0
      %1250 = vmatpush.bf16.msra.mxu0 0
      %1251 = vmatpush.bf16.msra.mxu0 0
      %1252 = vmatpush.bf16.msra.mxu0 0
      %1253 = vmatpush.bf16.msra.mxu0 0
      %1254 = vmatpush.bf16.msra.mxu0 0
      %1255 = vmatpush.bf16.msra.mxu0 %v1243
      %1256 = vmatmul.bf16.gmra.mxu0 %v1246
      %v1257 = vpop.f32.mrf.mxu0
      %v1258 = vadd.f32 0.0, %v1257
      %v1259 = vpop.f32.mrf.mxu0
      %v1260 = vadd.f32 0.0, %v1259
      %1261 = vdwg.mxu0
      %v1264 = vunpack.c.l.b16 %v1019
      %v1265 = vunpack.c.l.b16 %v1020
      %v1266 = vpack.c.b16 %v1265, %v1264
      %v1269 = vunpack.c.l.b16 %v1228
      %v1270 = vunpack.c.l.b16 %v1229
      %v1271 = vpack.c.b16 %v1270, %v1269
      %v1274 = vsel %vm1036, %v1266, 0
      %1276 = vmatpush.bf16.msra.mxu0 0
      %1277 = vmatpush.bf16.msra.mxu0 0
      %1278 = vmatpush.bf16.msra.mxu0 0
      %1279 = vmatpush.bf16.msra.mxu0 0
      %1280 = vmatpush.bf16.msra.mxu0 0
      %1281 = vmatpush.bf16.msra.mxu0 0
      %1282 = vmatpush.bf16.msra.mxu0 0
      %1283 = vmatpush.bf16.msra.mxu0 %v1271
      %1284 = vmatmul.bf16.gmra.mxu0 %v1274
      %v1285 = vpop.f32.mrf.mxu0
      %v1286 = vadd.f32 0.0, %v1285
      %v1287 = vpop.f32.mrf.mxu0
      %v1288 = vadd.f32 0.0, %v1287
      %1289 = vdwg.mxu0
      %v1292 = vunpack.c.l.b16 %v1021
      %v1293 = vunpack.c.l.b16 %v1022
      %v1294 = vpack.c.b16 %v1293, %v1292
      %v1297 = vunpack.c.l.b16 %v1230
      %v1298 = vunpack.c.l.b16 %v1231
      %v1299 = vpack.c.b16 %v1298, %v1297
      %v1302 = vsel %vm1036, %v1294, 0
      %1304 = vmatpush.bf16.msra.mxu0 0
      %1305 = vmatpush.bf16.msra.mxu0 0
      %1306 = vmatpush.bf16.msra.mxu0 0
      %1307 = vmatpush.bf16.msra.mxu0 0
      %1308 = vmatpush.bf16.msra.mxu0 0
      %1309 = vmatpush.bf16.msra.mxu0 0
      %1310 = vmatpush.bf16.msra.mxu0 0
      %1311 = vmatpush.bf16.msra.mxu0 %v1299
      %1312 = vmatmul.bf16.gmra.mxu0 %v1302
      %v1313 = vpop.f32.mrf.mxu0
      %v1314 = vadd.f32 0.0, %v1313
      %v1315 = vpop.f32.mrf.mxu0
      %v1316 = vadd.f32 0.0, %v1315
      %1317 = vdwg.mxu0
      %v1320 = vunpack.c.l.b16 %v1023
      %v1321 = vunpack.c.l.b16 %v1024
      %v1322 = vpack.c.b16 %v1321, %v1320
      %v1325 = vunpack.c.l.b16 %v1232
      %v1326 = vunpack.c.l.b16 %v1233
      %v1327 = vpack.c.b16 %v1326, %v1325
      %v1330 = vsel %vm1036, %v1322, 0
      %1332 = vmatpush.bf16.msra.mxu0 0
      %1333 = vmatpush.bf16.msra.mxu0 0
      %1334 = vmatpush.bf16.msra.mxu0 0
      %1335 = vmatpush.bf16.msra.mxu0 0
      %1336 = vmatpush.bf16.msra.mxu0 0
      %1337 = vmatpush.bf16.msra.mxu0 0
      %1338 = vmatpush.bf16.msra.mxu0 0
      %1339 = vmatpush.bf16.msra.mxu0 %v1327
      %1340 = vmatmul.bf16.gmra.mxu0 %v1330
      %v1341 = vpop.f32.mrf.mxu0
      %v1342 = vadd.f32 0.0, %v1341
      %v1343 = vpop.f32.mrf.mxu0
      %v1344 = vadd.f32 0.0, %v1343
      %1345 = vdwg.mxu0
      %v1350 = vrot.slane %v1286, 7
      %vm1351 = vcmask 1041409
      %v1352 = vsel %vm1351, %v1350, %v1258
      %vm1353 = vcmask 1045509
      %v1354 = vsel %vm1353, %v1350, %v1352
      %v1355 = vrot.slane %v1314, 6
      %vm1356 = vcmask 1042434
      %v1357 = vsel %vm1356, %v1355, %v1354
      %vm1358 = vcmask 1046534
      %v1359 = vsel %vm1358, %v1355, %v1357
      %v1360 = vrot.slane %v1342, 5
      %vm1361 = vcmask 1043459
      %v1362 = vsel %vm1361, %v1360, %v1359
      %vm1363 = vcmask 1047559
      %v1364 = vsel %vm1363, %v1360, %v1362
      %vm1366 = vcmask 125952
      %1367 = vst.msk [vmem:[#allocation3] sm:$0xf] %vm1366, %v1364
      %v1368 = vrot.slane %v1258, 1
      %v1369 = vsel %vm1351, %v1286, %v1368
      %v1370 = vsel %vm1353, %v1286, %v1369
      %v1371 = vrot.slane %v1314, 7
      %v1372 = vsel %vm1356, %v1371, %v1370
      %v1373 = vsel %vm1358, %v1371, %v1372
      %v1374 = vrot.slane %v1342, 6
      %v1375 = vsel %vm1361, %v1374, %v1373
      %v1376 = vsel %vm1363, %v1374, %v1375
      %1377 = vrot.lane.b32.xlu0 %v1376, 16
      %v1378 = vpop.permute.xlu0 %1377
      %vm1380 = vcmask 257152
      %1381 = vst.msk [vmem:[#allocation3] sm:$0xf] %vm1380, %v1378
      %v1382 = vrot.slane %v1258, 2
      %v1383 = vrot.slane %v1286, 1
      %v1384 = vsel %vm1351, %v1383, %v1382
      %v1385 = vsel %vm1353, %v1383, %v1384
      %v1386 = vsel %vm1356, %v1314, %v1385
      %v1387 = vsel %vm1358, %v1314, %v1386
      %v1388 = vrot.slane %v1342, 7
      %v1389 = vsel %vm1361, %v1388, %v1387
      %v1390 = vsel %vm1363, %v1388, %v1389
      %1391 = vrot.lane.b32.xlu0 %v1390, 32
      %v1392 = vpop.permute.xlu0 %1391
      %vm1394 = vcmask 388352
      %1395 = vst.msk [vmem:[#allocation3] sm:$0xf] %vm1394, %v1392
      %v1396 = vrot.slane %v1258, 3
      %v1397 = vrot.slane %v1286, 2
      %v1398 = vsel %vm1351, %v1397, %v1396
      %v1399 = vsel %vm1353, %v1397, %v1398
      %v1400 = vrot.slane %v1314, 1
      %v1401 = vsel %vm1356, %v1400, %v1399
      %v1402 = vsel %vm1358, %v1400, %v1401
      %v1403 = vsel %vm1361, %v1342, %v1402
      %v1404 = vsel %vm1363, %v1342, %v1403
      %1405 = vrot.lane.b32.xlu0 %v1404, 48
      %v1406 = vpop.permute.xlu0 %1405
      %vm1408 = vcmask 519552
      %1409 = vst.msk [vmem:[#allocation3] sm:$0xf] %vm1408, %v1406
      %1410 = vst.sshfl [vmem:[#allocation1] sm:$0xff pattern:$0x75316420] %v1258
      %s1411 = scalar_lea.vmem [#allocation1], 1
      %v1412 = vld [vmem:[%s1411] ss:$2 sm:$0xff]
      %1413 = vst.sshfl [vmem:[#allocation1 + $0x10] sm:$0xff pattern:$0x75316420] %v1286
      %s1414 = scalar_lea.vmem [#allocation1], 17
      %v1415 = vld [vmem:[%s1414] ss:$2 sm:$0xff]
      %1416 = vst.sshfl [vmem:[#allocation1 + $0x20] sm:$0xff pattern:$0x75316420] %v1314
      %s1417 = scalar_lea.vmem [#allocation1], 33
      %v1418 = vld [vmem:[%s1417] ss:$2 sm:$0xff]
      %1419 = vst.sshfl [vmem:[#allocation1 + $0x30] sm:$0xff pattern:$0x75316420] %v1342
      %s1420 = scalar_lea.vmem [#allocation1], 49
      %v1421 = vld [vmem:[%s1420] ss:$2 sm:$0xff]
      %v1422 = vrot.slane %v1415, 7
      %v1423 = vsel %vm1351, %v1422, %v1412
      %v1424 = vsel %vm1353, %v1422, %v1423
      %v1425 = vrot.slane %v1418, 6
      %v1426 = vsel %vm1356, %v1425, %v1424
      %v1427 = vsel %vm1358, %v1425, %v1426
      %v1428 = vrot.slane %v1421, 5
      %v1429 = vsel %vm1361, %v1428, %v1427
      %v1430 = vsel %vm1363, %v1428, %v1429
      %1431 = vrot.lane.b32.xlu0 %v1430, 64
      %v1432 = vpop.permute.xlu0 %1431
      %vm1434 = vcmask 650752
      %1435 = vst.msk [vmem:[#allocation3] sm:$0xf] %vm1434, %v1432
      %1436 = vst.sshfl [vmem:[#allocation1] sm:$0xff pattern:$0x75316420] %v1258
      %s1437 = scalar_lea.vmem [#allocation1], 1
      %v1438 = vld [vmem:[%s1437] ss:$2 sm:$0xff]
      %1439 = vst.sshfl [vmem:[#allocation1 + $0x10] sm:$0xff pattern:$0x75316420] %v1286
      %s1440 = scalar_lea.vmem [#allocation1], 17
      %v1441 = vld [vmem:[%s1440] ss:$2 sm:$0xff]
      %1442 = vst.sshfl [vmem:[#allocation1 + $0x20] sm:$0xff pattern:$0x75316420] %v1314
      %s1443 = scalar_lea.vmem [#allocation1], 33
      %v1444 = vld [vmem:[%s1443] ss:$2 sm:$0xff]
      %1445 = vst.sshfl [vmem:[#allocation1 + $0x30] sm:$0xff pattern:$0x75316420] %v1342
      %s1446 = scalar_lea.vmem [#allocation1], 49
      %v1447 = vld [vmem:[%s1446] ss:$2 sm:$0xff]
      %v1448 = vrot.slane %v1438, 1
      %v1449 = vsel %vm1351, %v1441, %v1448
      %v1450 = vsel %vm1353, %v1441, %v1449
      %v1451 = vrot.slane %v1444, 7
      %v1452 = vsel %vm1356, %v1451, %v1450
      %v1453 = vsel %vm1358, %v1451, %v1452
      %v1454 = vrot.slane %v1447, 6
      %v1455 = vsel %vm1361, %v1454, %v1453
      %v1456 = vsel %vm1363, %v1454, %v1455
      %1457 = vrot.lane.b32.xlu0 %v1456, 80
      %v1458 = vpop.permute.xlu0 %1457
      %vm1460 = vcmask 781952
      %1461 = vst.msk [vmem:[#allocation3] sm:$0xf] %vm1460, %v1458
      %1462 = vst.sshfl [vmem:[#allocation1] sm:$0xff pattern:$0x75316420] %v1258
      %s1463 = scalar_lea.vmem [#allocation1], 1
      %v1464 = vld [vmem:[%s1463] ss:$2 sm:$0xff]
      %1465 = vst.sshfl [vmem:[#allocation1 + $0x10] sm:$0xff pattern:$0x75316420] %v1286
      %s1466 = scalar_lea.vmem [#allocation1], 17
      %v1467 = vld [vmem:[%s1466] ss:$2 sm:$0xff]
      %1468 = vst.sshfl [vmem:[#allocation1 + $0x20] sm:$0xff pattern:$0x75316420] %v1314
      %s1469 = scalar_lea.vmem [#allocation1], 33
      %v1470 = vld [vmem:[%s1469] ss:$2 sm:$0xff]
      %1471 = vst.sshfl [vmem:[#allocation1 + $0x30] sm:$0xff pattern:$0x75316420] %v1342
      %s1472 = scalar_lea.vmem [#allocation1], 49
      %v1473 = vld [vmem:[%s1472] ss:$2 sm:$0xff]
      %v1474 = vrot.slane %v1464, 2
      %v1475 = vrot.slane %v1467, 1
      %v1476 = vsel %vm1351, %v1475, %v1474
      %v1477 = vsel %vm1353, %v1475, %v1476
      %v1478 = vsel %vm1356, %v1470, %v1477
      %v1479 = vsel %vm1358, %v1470, %v1478
      %v1480 = vrot.slane %v1473, 7
      %v1481 = vsel %vm1361, %v1480, %v1479
      %v1482 = vsel %vm1363, %v1480, %v1481
      %1483 = vrot.lane.b32.xlu0 %v1482, 96
      %v1484 = vpop.permute.xlu0 %1483
      %vm1486 = vcmask 913152
      %1487 = vst.msk [vmem:[#allocation3] sm:$0xf] %vm1486, %v1484
      %1488 = vst.sshfl [vmem:[#allocation1] sm:$0xff pattern:$0x75316420] %v1258
      %s1489 = scalar_lea.vmem [#allocation1], 1
      %v1490 = vld [vmem:[%s1489] ss:$2 sm:$0xff]
      %1491 = vst.sshfl [vmem:[#allocation1 + $0x10] sm:$0xff pattern:$0x75316420] %v1286
      %s1492 = scalar_lea.vmem [#allocation1], 17
      %v1493 = vld [vmem:[%s1492] ss:$2 sm:$0xff]
      %1494 = vst.sshfl [vmem:[#allocation1 + $0x20] sm:$0xff pattern:$0x75316420] %v1314
      %s1495 = scalar_lea.vmem [#allocation1], 33
      %v1496 = vld [vmem:[%s1495] ss:$2 sm:$0xff]
      %1497 = vst.sshfl [vmem:[#allocation1 + $0x30] sm:$0xff pattern:$0x75316420] %v1342
      %s1498 = scalar_lea.vmem [#allocation1], 49
      %v1499 = vld [vmem:[%s1498] ss:$2 sm:$0xff]
      %v1500 = vrot.slane %v1490, 3
      %v1501 = vrot.slane %v1493, 2
      %v1502 = vsel %vm1351, %v1501, %v1500
      %v1503 = vsel %vm1353, %v1501, %v1502
      %v1504 = vrot.slane %v1496, 1
      %v1505 = vsel %vm1356, %v1504, %v1503
      %v1506 = vsel %vm1358, %v1504, %v1505
      %v1507 = vsel %vm1361, %v1499, %v1506
      %v1508 = vsel %vm1363, %v1499, %v1507
      %1509 = vrot.lane.b32.xlu0 %v1508, 112
      %v1510 = vpop.permute.xlu0 %1509
      %vm1512 = vcmask 1044352
      %1513 = vst.msk [vmem:[#allocation3] sm:$0xf] %vm1512, %v1510
      %v1518 = vrot.slane %v1288, 7
      %v1519 = vsel %vm1351, %v1518, %v1260
      %v1520 = vsel %vm1353, %v1518, %v1519
      %v1521 = vrot.slane %v1316, 6
      %v1522 = vsel %vm1356, %v1521, %v1520
      %v1523 = vsel %vm1358, %v1521, %v1522
      %v1524 = vrot.slane %v1344, 5
      %v1525 = vsel %vm1361, %v1524, %v1523
      %v1526 = vsel %vm1363, %v1524, %v1525
      %1528 = vst.msk [vmem:[#allocation3 + $0x4] sm:$0xf] %vm1366, %v1526
      %v1529 = vrot.slane %v1260, 1
      %v1530 = vsel %vm1351, %v1288, %v1529
      %v1531 = vsel %vm1353, %v1288, %v1530
      %v1532 = vrot.slane %v1316, 7
      %v1533 = vsel %vm1356, %v1532, %v1531
      %v1534 = vsel %vm1358, %v1532, %v1533
      %v1535 = vrot.slane %v1344, 6
      %v1536 = vsel %vm1361, %v1535, %v1534
      %v1537 = vsel %vm1363, %v1535, %v1536
      %1538 = vrot.lane.b32.xlu0 %v1537, 16
      %v1539 = vpop.permute.xlu0 %1538
      %1541 = vst.msk [vmem:[#allocation3 + $0x4] sm:$0xf] %vm1380, %v1539
      %v1542 = vrot.slane %v1260, 2
      %v1543 = vrot.slane %v1288, 1
      %v1544 = vsel %vm1351, %v1543, %v1542
      %v1545 = vsel %vm1353, %v1543, %v1544
      %v1546 = vsel %vm1356, %v1316, %v1545
      %v1547 = vsel %vm1358, %v1316, %v1546
      %v1548 = vrot.slane %v1344, 7
      %v1549 = vsel %vm1361, %v1548, %v1547
      %v1550 = vsel %vm1363, %v1548, %v1549
      %1551 = vrot.lane.b32.xlu0 %v1550, 32
      %v1552 = vpop.permute.xlu0 %1551
      %1554 = vst.msk [vmem:[#allocation3 + $0x4] sm:$0xf] %vm1394, %v1552
      %v1555 = vrot.slane %v1260, 3
      %v1556 = vrot.slane %v1288, 2
      %v1557 = vsel %vm1351, %v1556, %v1555
      %v1558 = vsel %vm1353, %v1556, %v1557
      %v1559 = vrot.slane %v1316, 1
      %v1560 = vsel %vm1356, %v1559, %v1558
      %v1561 = vsel %vm1358, %v1559, %v1560
      %v1562 = vsel %vm1361, %v1344, %v1561
      %v1563 = vsel %vm1363, %v1344, %v1562
      %1564 = vrot.lane.b32.xlu0 %v1563, 48
      %v1565 = vpop.permute.xlu0 %1564
      %1567 = vst.msk [vmem:[#allocation3 + $0x4] sm:$0xf] %vm1408, %v1565
      %1568 = vst.sshfl [vmem:[#allocation1] sm:$0xff pattern:$0x75316420] %v1260
      %s1569 = scalar_lea.vmem [#allocation1], 1
      %v1570 = vld [vmem:[%s1569] ss:$2 sm:$0xff]
      %1571 = vst.sshfl [vmem:[#allocation1 + $0x10] sm:$0xff pattern:$0x75316420] %v1288
      %s1572 = scalar_lea.vmem [#allocation1], 17
      %v1573 = vld [vmem:[%s1572] ss:$2 sm:$0xff]
      %1574 = vst.sshfl [vmem:[#allocation1 + $0x20] sm:$0xff pattern:$0x75316420] %v1316
      %s1575 = scalar_lea.vmem [#allocation1], 33
      %v1576 = vld [vmem:[%s1575] ss:$2 sm:$0xff]
      %1577 = vst.sshfl [vmem:[#allocation1 + $0x30] sm:$0xff pattern:$0x75316420] %v1344
      %s1578 = scalar_lea.vmem [#allocation1], 49
      %v1579 = vld [vmem:[%s1578] ss:$2 sm:$0xff]
      %v1580 = vrot.slane %v1573, 7
      %v1581 = vsel %vm1351, %v1580, %v1570
      %v1582 = vsel %vm1353, %v1580, %v1581
      %v1583 = vrot.slane %v1576, 6
      %v1584 = vsel %vm1356, %v1583, %v1582
      %v1585 = vsel %vm1358, %v1583, %v1584
      %v1586 = vrot.slane %v1579, 5
      %v1587 = vsel %vm1361, %v1586, %v1585
      %v1588 = vsel %vm1363, %v1586, %v1587
      %1589 = vrot.lane.b32.xlu0 %v1588, 64
      %v1590 = vpop.permute.xlu0 %1589
      %1592 = vst.msk [vmem:[#allocation3 + $0x4] sm:$0xf] %vm1434, %v1590
      %1593 = vst.sshfl [vmem:[#allocation1] sm:$0xff pattern:$0x75316420] %v1260
      %s1594 = scalar_lea.vmem [#allocation1], 1
      %v1595 = vld [vmem:[%s1594] ss:$2 sm:$0xff]
      %1596 = vst.sshfl [vmem:[#allocation1 + $0x10] sm:$0xff pattern:$0x75316420] %v1288
      %s1597 = scalar_lea.vmem [#allocation1], 17
      %v1598 = vld [vmem:[%s1597] ss:$2 sm:$0xff]
      %1599 = vst.sshfl [vmem:[#allocation1 + $0x20] sm:$0xff pattern:$0x75316420] %v1316
      %s1600 = scalar_lea.vmem [#allocation1], 33
      %v1601 = vld [vmem:[%s1600] ss:$2 sm:$0xff]
      %1602 = vst.sshfl [vmem:[#allocation1 + $0x30] sm:$0xff pattern:$0x75316420] %v1344
      %s1603 = scalar_lea.vmem [#allocation1], 49
      %v1604 = vld [vmem:[%s1603] ss:$2 sm:$0xff]
      %v1605 = vrot.slane %v1595, 1
      %v1606 = vsel %vm1351, %v1598, %v1605
      %v1607 = vsel %vm1353, %v1598, %v1606
      %v1608 = vrot.slane %v1601, 7
      %v1609 = vsel %vm1356, %v1608, %v1607
      %v1610 = vsel %vm1358, %v1608, %v1609
      %v1611 = vrot.slane %v1604, 6
      %v1612 = vsel %vm1361, %v1611, %v1610
      %v1613 = vsel %vm1363, %v1611, %v1612
      %1614 = vrot.lane.b32.xlu0 %v1613, 80
      %v1615 = vpop.permute.xlu0 %1614
      %1617 = vst.msk [vmem:[#allocation3 + $0x4] sm:$0xf] %vm1460, %v1615
      %1618 = vst.sshfl [vmem:[#allocation1] sm:$0xff pattern:$0x75316420] %v1260
      %s1619 = scalar_lea.vmem [#allocation1], 1
      %v1620 = vld [vmem:[%s1619] ss:$2 sm:$0xff]
      %1621 = vst.sshfl [vmem:[#allocation1 + $0x10] sm:$0xff pattern:$0x75316420] %v1288
      %s1622 = scalar_lea.vmem [#allocation1], 17
      %v1623 = vld [vmem:[%s1622] ss:$2 sm:$0xff]
      %1624 = vst.sshfl [vmem:[#allocation1 + $0x20] sm:$0xff pattern:$0x75316420] %v1316
      %s1625 = scalar_lea.vmem [#allocation1], 33
      %v1626 = vld [vmem:[%s1625] ss:$2 sm:$0xff]
      %1627 = vst.sshfl [vmem:[#allocation1 + $0x30] sm:$0xff pattern:$0x75316420] %v1344
      %s1628 = scalar_lea.vmem [#allocation1], 49
      %v1629 = vld [vmem:[%s1628] ss:$2 sm:$0xff]
      %v1630 = vrot.slane %v1620, 2
      %v1631 = vrot.slane %v1623, 1
      %v1632 = vsel %vm1351, %v1631, %v1630
      %v1633 = vsel %vm1353, %v1631, %v1632
      %v1634 = vsel %vm1356, %v1626, %v1633
      %v1635 = vsel %vm1358, %v1626, %v1634
      %v1636 = vrot.slane %v1629, 7
      %v1637 = vsel %vm1361, %v1636, %v1635
      %v1638 = vsel %vm1363, %v1636, %v1637
      %1639 = vrot.lane.b32.xlu0 %v1638, 96
      %v1640 = vpop.permute.xlu0 %1639
      %1642 = vst.msk [vmem:[#allocation3 + $0x4] sm:$0xf] %vm1486, %v1640
      %1643 = vst.sshfl [vmem:[#allocation1] sm:$0xff pattern:$0x75316420] %v1260
      %s1644 = scalar_lea.vmem [#allocation1], 1
      %v1645 = vld [vmem:[%s1644] ss:$2 sm:$0xff]
      %1646 = vst.sshfl [vmem:[#allocation1 + $0x10] sm:$0xff pattern:$0x75316420] %v1288
      %s1647 = scalar_lea.vmem [#allocation1], 17
      %v1648 = vld [vmem:[%s1647] ss:$2 sm:$0xff]
      %1649 = vst.sshfl [vmem:[#allocation1 + $0x20] sm:$0xff pattern:$0x75316420] %v1316
      %s1650 = scalar_lea.vmem [#allocation1], 33
      %v1651 = vld [vmem:[%s1650] ss:$2 sm:$0xff]
      %1652 = vst.sshfl [vmem:[#allocation1 + $0x30] sm:$0xff pattern:$0x75316420] %v1344
      %s1653 = scalar_lea.vmem [#allocation1], 49
      %v1654 = vld [vmem:[%s1653] ss:$2 sm:$0xff]
      %v1655 = vrot.slane %v1645, 3
      %v1656 = vrot.slane %v1648, 2
      %v1657 = vsel %vm1351, %v1656, %v1655
      %v1658 = vsel %vm1353, %v1656, %v1657
      %v1659 = vrot.slane %v1651, 1
      %v1660 = vsel %vm1356, %v1659, %v1658
      %v1661 = vsel %vm1358, %v1659, %v1660
      %v1662 = vsel %vm1361, %v1654, %v1661
      %v1663 = vsel %vm1363, %v1654, %v1662
      %1664 = vrot.lane.b32.xlu0 %v1663, 112
      %v1665 = vpop.permute.xlu0 %1664
      %1667 = vst.msk [vmem:[#allocation3 + $0x4] sm:$0xf] %vm1512, %v1665
      %v1668 = vld [vmem:[#allocation3] sm:$0xff]
      %v1669 = vadd.f32 %v145, %v1668
      %1670 = vst [vmem:[%s143] sm:$0xff] %v1669
      %p1671 = scmp.lt.s32.totalorder %s13, 1
      %s1672 = scalar_select %p1671, %s13, 1
      %s1673 = smul.addr %s1672, 2
      %s1674 = smul.addr %s1673, 4
      %s1675 = scalar_lea.vmem %s2, %s1674
      // Predicated region
      $region29: #{attention_forward.1} parent=27 // pred_check
        %p1676 = pneg %p78
      $region30: #{attention_forward.1} parent=27 // pred_check_branch
        %1678 = sbr.rel (%p1676) target = $region32
      $region31: #{attention_forward.1} parent=27 // pred_region
        _
      $region32: #{attention_forward.1} parent=27 // pred_fallthru
        _
    $region28: #{attention_forward.1} parent=5 // pred_fallthru
      _
    %p1679 = scmp.le.s32.totalorder 2, %s8
    // Predicated region
    $region33: #{attention_forward.1} parent=5 // pred_check
      %p1680 = pneg %p1679
    $region34: #{attention_forward.1} parent=5 // pred_check_branch
      %1682 = sbr.rel (%p1680) target = $region36
    $region35: #{attention_forward.1} parent=5 // pred_region
      %s1683 = ssub.s32 %s8, 2
      // Predicated region
      $region37: #{attention_forward.1} parent=35 // pred_check
        %p1684 = pneg %p84
      $region38: #{attention_forward.1} parent=35 // pred_check_branch
        %1686 = sbr.rel (%p1684) target = $region40
      $region39: #{attention_forward.1} parent=35 // pred_region
        %p1687 = scmp.lt.s32.totalorder %s14, 1
        %s1688 = scalar_select %p1687, %s14, 1
        %s1689 = smul.addr %s1688, 2
        %s1690 = smul.addr %s1689, 4
        %s1691 = scalar_lea.vmem %s2, %s1690
      $region40: #{attention_forward.1} parent=35 // pred_fallthru
        _
    $region36: #{attention_forward.1} parent=5 // pred_fallthru
      _
  $region6: #{attention_forward.1} parent=0 // loop_footer
    %s12 = sadd.s32 1, %s8
  $region7: #{attention_forward.1} parent=0 // loop_footer_branch
    %7 = sbr.rel target = $region3
  $region8: #{attention_forward.1} parent=0 // loop_exit
    _

</llo_original>
